<compile_context>
chip_gen: v7x
topology: tpu7x:2x2x1
jax: 0.10.0
libtpu: 0.0.40
codegen_flags: <defaults>
</compile_context>

<pallas_src>
import math

import jax
import jax.numpy as jnp
from jax.experimental import pallas as pl
from jax.experimental.pallas import tpu as pltpu


def make_transtab_layer(d_model, nhead, dim_feedforward, seq_len, eps=1e-5):
    assert d_model % nhead == 0
    head_dim = d_model // nhead
    scale = 1.0 / math.sqrt(head_dim)
    S, D, H, FF = seq_len, d_model, nhead, dim_feedforward
    f32, bf16 = jnp.float32, jnp.bfloat16

    def _layer_norm(v, gamma, beta):
        mu = jnp.mean(v, axis=-1, keepdims=True)
        var = jnp.mean((v - mu) ** 2, axis=-1, keepdims=True)
        return (v - mu) * jax.lax.rsqrt(var + eps) * gamma + beta

    def _auto_batch_blocks(B):
        # v7x has 2 TensorCores per chip: shard batch blocks across them when B allows
        # and the per-core batch block keeps a Mosaic-friendly (multiple-of-8) sublane
        # count for the lane-dense output block.  v5e/v6e have 1 TC -> no benefit.
        try:
            kind = jax.devices()[0].device_kind.lower().replace(" ", "")
            is_v7 = ("v7" in kind) or ("tpu7" in kind)
        except Exception:
            is_v7 = False
        if is_v7 and B % 2 == 0 and (B // 2) % 8 == 0:
            return 2
        return 1

    def apply(x, kpm, params, *, batch_blocks=None):
        B = x.shape[0]
        if batch_blocks is None:
            batch_blocks = _auto_batch_blocks(B)
        assert B % batch_blocks == 0
        Bb = B // batch_blocks          # sequences per grid step
        N = Bb * S                      # tokens per grid step

        # ---------------- wrapper-side weight prep ----------------
        wqkv, bqkv = params["wqkv"], params["bqkv"]          # (3D, D), (1, 3D)
        # fold the softmax scale into the Q projection (weights AND bias)
        col_scale = jnp.concatenate(
            [jnp.full((1, D), scale, f32), jnp.ones((1, 2 * D), f32)], axis=1)
        wqkv_t = (wqkv.T * col_scale).astype(bf16)           # (D, 3D), in -> out
        wo_t = params["wo"].T.astype(bf16)                   # (D, D)
        # gate column fused into linear1 -> one (D, FF+1) matmul
        w1g_t = jnp.concatenate([params["w1"].T, params["wg"].T],
                                axis=1).astype(bf16)         # (D, FF+1)
        w2_t = params["w2"].T.astype(bf16)                   # (FF, D)
        b1g = jnp.concatenate([params["b1"], jnp.zeros((1, 1), f32)], axis=1)

        # all (1, D) vectors packed into one slab: one DMA descriptor, one VMEM tile
        # rows: 0=bq*scale 1=bk 2=bv 3=bo 4=b2 5=g1 6=be1 7=g2 8=be2
        bqkv_s = bqkv * col_scale
        slab = jnp.concatenate(
            [bqkv_s[:, 0:D], bqkv_s[:, D:2 * D], bqkv_s[:, 2 * D:3 * D],
             params["bo"], params["b2"],
             params["g1"], params["be1"], params["g2"], params["be2"]], axis=0)

        kpm3 = kpm.reshape(B, 1, S).astype(f32)
        weight_args = (wqkv_t, wo_t, w1g_t, w2_t, slab, b1g)

        # ---------------- kernel ----------------
        def make_kernel(lane_dense):
            def kernel(x_ref, kpm_ref, wqkv_ref, wo_ref, w1g_ref, w2_ref,
                       slab_ref, b1g_ref, out_ref, cat_ref):
                x2d = x_ref[...].reshape(N, D)                           # (N, D) f32
                # key_padding_mask: module does ~mask.bool(); 0 => key is ignored
                mask_bias = jnp.where(kpm_ref[...] > 0.0, 0.0, -1e9)     # (Bb, 1, S)

                # ---- self-attention: one fused (N,D)x(D,3D) MXU push ----
                qkv = jnp.dot(x2d.astype(bf16), wqkv_ref[...],
                              preferred_element_type=f32)                # (N, 3D)
                q3 = (qkv[:, 0 * D:1 * D] + slab_ref[0:1, :]).reshape(Bb, S, D)
                k3 = (qkv[:, 1 * D:2 * D] + slab_ref[1:2, :]).reshape(Bb, S, D)
                v3 = (qkv[:, 2 * D:3 * D] + slab_ref[2:3, :]).reshape(Bb, S, D)

                for h in range(H):                   # static unroll, H is small
                    lo, hi = h * head_dim, (h + 1) * head_dim
                    qh = q3[:, :, lo:hi].astype(bf16)
                    kh = k3[:, :, lo:hi].astype(bf16)
                    vh = v3[:, :, lo:hi].astype(bf16)
                    # scale already folded into Q
                    s = jnp.einsum('bqd,bkd->bqk', qh, kh,
                                   preferred_element_type=f32)           # (Bb, S, S)
                    s = s + mask_bias
                    s = s - jnp.max(s, axis=-1, keepdims=True)
                    p = jnp.exp(s)
                    p = p * pl.reciprocal(jnp.sum(p, axis=-1, keepdims=True),
                                          approx=True)
                    oh = jnp.einsum('bqk,bkd->bqd', p.astype(bf16), vh,
                                    preferred_element_type=f32)          # (Bb, S, hd)
                    # concat heads in VMEM (masked 8-lane store) so the output
                    # projection is ONE K=D push instead of H narrow K=hd pushes.
                    cat_ref[:, lo:hi] = oh.reshape(N, head_dim).astype(bf16)

                attn2d = jnp.dot(cat_ref[...], wo_ref[...],
                                 preferred_element_type=f32) + slab_ref[3:4, :]

                # norm_first=False, use_layer_norm=True path; dropouts identity (eval)
                y = _layer_norm(x2d + attn2d, slab_ref[5:6, :], slab_ref[6:7, :])

                # ---- gated feed-forward: gate column fused into linear1 ----
                hg = jnp.dot(y.astype(bf16), w1g_ref[...],
                             preferred_element_type=f32) + b1g_ref[...]  # (N, FF+1)
                gate = jax.nn.sigmoid(hg[:, FF:FF + 1])                  # (N, 1)
                hmid = jnp.maximum(hg[:, 0:FF] * gate, 0.0)              # relu(h * g)
                ff = jnp.dot(hmid.astype(bf16), w2_ref[...],
                             preferred_element_type=f32) + slab_ref[4:5, :]

                out = _layer_norm(y + ff, slab_ref[7:8, :], slab_ref[8:9, :])
                if lane_dense:
                    # lane-dense store: last dim S*D (>=128-multiple here)
                    out_ref[...] = out.reshape(Bb, S * D).astype(out_ref.dtype)
                else:
                    out_ref[...] = out.reshape(Bb, S, D).astype(out_ref.dtype)
            return kernel

        def full_spec(w):
            nd = w.ndim
            return pl.BlockSpec(w.shape, lambda b, _n=nd: (0,) * _n)

        in_specs = [
            pl.BlockSpec((Bb, S, D), lambda b: (b, 0, 0)),
            pl.BlockSpec((Bb, 1, S), lambda b: (b, 0, 0)),
        ] + [full_spec(w) for w in weight_args]

        flops = 2 * B * S * (3 * D * D + 2 * S * D + D * D + D * (FF + 1) + FF * D)
        transcendentals = B * S * (H * S + H + 2 + 1)       # exp + rcp + 2*rsqrt + sigmoid
        bytes_accessed = (4 * (2 * B * S * D + B * S)                      # x in/out + mask
                          + 2 * (3 * D * D + D * D + D * (FF + 1) + FF * D)  # bf16 weights
                          + 4 * (9 * D + (FF + 1)))                        # f32 slab + b1g
        cost = pl.CostEstimate(flops=flops, transcendentals=transcendentals,
                               bytes_accessed=bytes_accessed)

        def build(lane_dense):
            if lane_dense:
                out_shape = jax.ShapeDtypeStruct((B, S * D), f32)
                out_spec = pl.BlockSpec((Bb, S * D), lambda b: (b, 0))
            else:
                out_shape = jax.ShapeDtypeStruct((B, S, D), f32)
                out_spec = pl.BlockSpec((Bb, S, D), lambda b: (b, 0, 0))
            return pl.pallas_call(
                make_kernel(lane_dense),
                out_shape=out_shape,
                grid=(batch_blocks,),
                in_specs=in_specs,
                out_specs=out_spec,
                scratch_shapes=[pltpu.VMEM((N, D), bf16)],   # concatenated heads
                compiler_params=pltpu.CompilerParams(
                    dimension_semantics=("parallel",)),
                cost_estimate=cost,
            )

        args = (x, kpm3, *weight_args)
        # NOTE: `apply` is intended to be called eagerly (as in the self-test below)
        # so a lane-dense lowering failure can be caught and the safe layout used.
        try:
            out2d = jax.block_until_ready(build(True)(*args))
            return out2d.reshape(B, S, D)
        except Exception:
            # TODO(synk): the lane-dense (Bb, S*D) store needs a sublane->lane fold
            # that Mosaic cannot always lower at D < 128; fall back to the proven
            # (B, S, D) masked-store layout in that case.
            return build(False)(*args)

    return apply


def reference_layer(x, kpm, params, nhead, eps=1e-5):
    """Pure-JAX reference mirroring the PyTorch forward (eval mode, f32)."""
    B, S, D = x.shape
    hd = D // nhead

    def ln(v, g, b):
        mu = jnp.mean(v, axis=-1, keepdims=True)
        var = jnp.mean((v - mu) ** 2, axis=-1, keepdims=True)
        return (v - mu) / jnp.sqrt(var + eps) * g + b

    qkv = jnp.einsum("bsd,ed->bse", x, params["wqkv"]) + params["bqkv"]
    q, k, v = jnp.split(qkv, 3, axis=-1)
    q = q.reshape(B, S, nhead, hd).transpose(0, 2, 1, 3)
    k = k.reshape(B, S, nhead, hd).transpose(0, 2, 1, 3)
    v = v.reshape(B, S, nhead, hd).transpose(0, 2, 1, 3)
    s = jnp.einsum("bhqd,bhkd->bhqk", q, k) / math.sqrt(hd)
    bias = jnp.where(kpm[:, None, None, :] > 0, 0.0, -1e9)
    p = jax.nn.softmax(s + bias, axis=-1)
    attn = jnp.einsum("bhqk,bhkd->bhqd", p, v).transpose(0, 2, 1, 3).reshape(B, S, D)
    attn = jnp.einsum("bsd,ed->bse", attn, params["wo"]) + params["bo"]

    y = ln(x + attn, params["g1"], params["be1"])
    g = jax.nn.sigmoid(jnp.einsum("bsd,od->bso", y, params["wg"]))
    h = jnp.einsum("bsd,fd->bsf", y, params["w1"]) + params["b1"]
    h = jax.nn.relu(h * g)
    ff = jnp.einsum("bsf,df->bsd", h, params["w2"]) + params["b2"]
    return ln(y + ff, params["g2"], params["be2"])


if __name__ == "__main__":
    B, S, D, H, FF = 2, 8, 32, 4, 64

    key = jax.random.PRNGKey(0)
    ks = jax.random.split(key, 10)

    params = {
        "wqkv": 0.05 * jax.random.normal(ks[0], (3 * D, D), jnp.float32),
        "bqkv": 0.05 * jax.random.normal(ks[1], (1, 3 * D), jnp.float32),
        "wo":   0.05 * jax.random.normal(ks[2], (D, D), jnp.float32),
        "bo":   0.05 * jax.random.normal(ks[3], (1, D), jnp.float32),
        "w1":   0.05 * jax.random.normal(ks[4], (FF, D), jnp.float32),
        "b1":   0.05 * jax.random.normal(ks[5], (1, FF), jnp.float32),
        "w2":   0.05 * jax.random.normal(ks[6], (D, FF), jnp.float32),
        "b2":   0.05 * jax.random.normal(ks[7], (1, D), jnp.float32),
        "wg":   0.05 * jax.random.normal(ks[8], (1, D), jnp.float32),
        "g1":   jnp.ones((1, D), jnp.float32),
        "be1":  jnp.zeros((1, D), jnp.float32),
        "g2":   jnp.ones((1, D), jnp.float32),
        "be2":  jnp.zeros((1, D), jnp.float32),
    }

    x = jax.random.normal(ks[9], (B, S, D), jnp.float32)
    # key_padding_mask as given to the module: 1 = valid token, 0 = padding
    # (the module inverts it to PyTorch's "True = ignore" convention).
    kpm = jnp.array([[1] * S, [1] * (S - 2) + [0, 0]], jnp.float32)

    layer = make_transtab_layer(D, H, FF, S)
    out = layer(x, kpm, params)
    out = jax.block_until_ready(out)

    ref = reference_layer(x, kpm, params, H)
    assert out.shape == (B, S, D)
    # tolerance loosened for bf16 MXU operands (f32 accumulation) and the EUP
    # approximate reciprocal in the softmax denominator.
    assert jnp.allclose(out, ref, rtol=3e-2, atol=3e-2), \
        f"max err {jnp.max(jnp.abs(out - ref))}"
    print("KERNEL_OK")
</pallas_src>

<mosaic_0001>
module attributes {stable_mosaic.version = 11 : i64} {
  func.func @kernel(%arg0: i32, %arg1: memref<2x8x32xf32, #tpu.memory_space<vmem>>, %arg2: memref<2x1x8xf32, #tpu.memory_space<vmem>>, %arg3: memref<32x96xbf16, #tpu.memory_space<vmem>>, %arg4: memref<32x32xbf16, #tpu.memory_space<vmem>>, %arg5: memref<32x65xbf16, #tpu.memory_space<vmem>>, %arg6: memref<64x32xbf16, #tpu.memory_space<vmem>>, %arg7: memref<9x32xf32, #tpu.memory_space<vmem>>, %arg8: memref<1x65xf32, #tpu.memory_space<vmem>>, %arg9: memref<2x256xf32, #tpu.memory_space<vmem>>, %arg10: memref<16x32xbf16, #tpu.memory_space<vmem>>) attributes {dimension_semantics = [#tpu.dimension_semantics<parallel>], iteration_bounds = array<i64: 1>, scalar_prefetch = 0 : i64, scratch_operands = 1 : i64, tpu.core_type = #tpu.core_type<tc>, window_params = [{transform_indices = @transform_0, window_bounds = array<i64: 2, 8, 32>}, {transform_indices = @transform_1, window_bounds = array<i64: 2, 1, 8>}, {pipeline_mode = #tpu.pipeline_mode<synchronous>, transform_indices = @transform_2, window_bounds = array<i64: 32, 96>}, {pipeline_mode = #tpu.pipeline_mode<synchronous>, transform_indices = @transform_3, window_bounds = array<i64: 32, 32>}, {pipeline_mode = #tpu.pipeline_mode<synchronous>, transform_indices = @transform_4, window_bounds = array<i64: 32, 65>}, {pipeline_mode = #tpu.pipeline_mode<synchronous>, transform_indices = @transform_5, window_bounds = array<i64: 64, 32>}, {pipeline_mode = #tpu.pipeline_mode<synchronous>, transform_indices = @transform_6, window_bounds = array<i64: 9, 32>}, {pipeline_mode = #tpu.pipeline_mode<synchronous>, transform_indices = @transform_7, window_bounds = array<i64: 1, 65>}, {transform_indices = @transform_8, window_bounds = array<i64: 2, 256>}]} {
    %c0 = arith.constant 0 : index
    %c0_0 = arith.constant 0 : index
    %c0_1 = arith.constant 0 : index
    %0 = vector.load %arg1[%c0, %c0_0, %c0_1] : memref<2x8x32xf32, #tpu.memory_space<vmem>>, vector<2x8x32xf32>
    %1 = vector.shape_cast %0 : vector<2x8x32xf32> to vector<16x32xf32>
    %c0_2 = arith.constant 0 : index
    %c0_3 = arith.constant 0 : index
    %c0_4 = arith.constant 0 : index
    %2 = vector.load %arg2[%c0_2, %c0_3, %c0_4] : memref<2x1x8xf32, #tpu.memory_space<vmem>>, vector<2x1x8xf32>
    %cst = arith.constant 0.000000e+00 : f32
    %3 = vector.broadcast %cst : f32 to vector<2x1x8xf32>
    %4 = arith.cmpf ogt, %2, %3 : vector<2x1x8xf32>
    %cst_5 = arith.constant 0.000000e+00 : f32
    %cst_6 = arith.constant -1.000000e+09 : f32
    %5 = vector.broadcast %cst_5 : f32 to vector<2x1x8xf32>
    %6 = vector.broadcast %cst_6 : f32 to vector<2x1x8xf32>
    %7 = arith.select %4, %5, %6 : vector<2x1x8xi1>, vector<2x1x8xf32>
    %8 = arith.truncf %1 : vector<16x32xf32> to vector<16x32xbf16>
    %c0_7 = arith.constant 0 : index
    %c0_8 = arith.constant 0 : index
    %9 = vector.load %arg3[%c0_7, %c0_8] : memref<32x96xbf16, #tpu.memory_space<vmem>>, vector<32x96xbf16>
    %cst_9 = arith.constant dense<0.000000e+00> : vector<16x96xf32>
    %10 = tpu.matmul %8, %9, %cst_9 {dimension_numbers = #tpu.dot_dimension_numbers<[1], [0], [0], [1], [0, 0, 1, 1], [], []>} : vector<16x32xbf16>, vector<32x96xbf16>, vector<16x96xf32> -> vector<16x96xf32>
    %11 = vector.extract_strided_slice %10 {offsets = [0, 0], sizes = [16, 32], strides = [1, 1]} : vector<16x96xf32> to vector<16x32xf32>
    %c0_10 = arith.constant 0 : index
    %c0_11 = arith.constant 0 : index
    %12 = vector.load %arg7[%c0_10, %c0_11] : memref<9x32xf32, #tpu.memory_space<vmem>>, vector<1x32xf32>
    %13 = vector.broadcast %12 : vector<1x32xf32> to vector<16x32xf32>
    %14 = arith.addf %11, %13 : vector<16x32xf32>
    %15 = vector.shape_cast %14 : vector<16x32xf32> to vector<2x8x32xf32>
    %16 = vector.extract_strided_slice %10 {offsets = [0, 32], sizes = [16, 32], strides = [1, 1]} : vector<16x96xf32> to vector<16x32xf32>
    %c1 = arith.constant 1 : index
    %c0_12 = arith.constant 0 : index
    %17 = vector.load %arg7[%c1, %c0_12] : memref<9x32xf32, #tpu.memory_space<vmem>>, vector<1x32xf32>
    %18 = vector.broadcast %17 : vector<1x32xf32> to vector<16x32xf32>
    %19 = arith.addf %16, %18 : vector<16x32xf32>
    %20 = vector.shape_cast %19 : vector<16x32xf32> to vector<2x8x32xf32>
    %21 = vector.extract_strided_slice %10 {offsets = [0, 64], sizes = [16, 32], strides = [1, 1]} : vector<16x96xf32> to vector<16x32xf32>
    %c2 = arith.constant 2 : index
    %c0_13 = arith.constant 0 : index
    %22 = vector.load %arg7[%c2, %c0_13] : memref<9x32xf32, #tpu.memory_space<vmem>>, vector<1x32xf32>
    %23 = vector.broadcast %22 : vector<1x32xf32> to vector<16x32xf32>
    %24 = arith.addf %21, %23 : vector<16x32xf32>
    %25 = vector.shape_cast %24 : vector<16x32xf32> to vector<2x8x32xf32>
    %26 = vector.extract_strided_slice %15 {offsets = [0, 0, 0], sizes = [2, 8, 8], strides = [1, 1, 1]} : vector<2x8x32xf32> to vector<2x8x8xf32>
    %27 = arith.truncf %26 : vector<2x8x8xf32> to vector<2x8x8xbf16>
    %28 = vector.extract_strided_slice %20 {offsets = [0, 0, 0], sizes = [2, 8, 8], strides = [1, 1, 1]} : vector<2x8x32xf32> to vector<2x8x8xf32>
    %29 = arith.truncf %28 : vector<2x8x8xf32> to vector<2x8x8xbf16>
    %30 = vector.extract_strided_slice %25 {offsets = [0, 0, 0], sizes = [2, 8, 8], strides = [1, 1, 1]} : vector<2x8x32xf32> to vector<2x8x8xf32>
    %31 = arith.truncf %30 : vector<2x8x8xf32> to vector<2x8x8xbf16>
    "tpu.trace_start"() <{level = 10 : i32, message = "bqd,bkd->bqk"}> : () -> ()
    %cst_14 = arith.constant dense<0.000000e+00> : vector<2x8x8xf32>
    %32 = tpu.matmul %27, %29, %cst_14 {dimension_numbers = #tpu.dot_dimension_numbers<[2], [2], [1], [1], [0, 0, 0, 1, 1, 1], [0], [0]>} : vector<2x8x8xbf16>, vector<2x8x8xbf16>, vector<2x8x8xf32> -> vector<2x8x8xf32>
    "tpu.trace_stop"() : () -> ()
    %33 = vector.broadcast %7 : vector<2x1x8xf32> to vector<2x8x8xf32>
    %34 = arith.addf %32, %33 : vector<2x8x8xf32>
    %cst_15 = arith.constant dense<0xFF800000> : vector<2x8xf32>
    %35 = vector.multi_reduction <maximumf>, %34, %cst_15 [2] : vector<2x8x8xf32> to vector<2x8xf32>
    %36 = vector.shape_cast %35 : vector<2x8xf32> to vector<2x8x1xf32>
    %37 = vector.broadcast %36 : vector<2x8x1xf32> to vector<2x8x8xf32>
    %38 = arith.subf %34, %37 : vector<2x8x8xf32>
    %39 = math.exp %38 : vector<2x8x8xf32>
    %cst_16 = arith.constant dense<0.000000e+00> : vector<2x8xf32>
    %40 = vector.multi_reduction <add>, %39, %cst_16 [2] : vector<2x8x8xf32> to vector<2x8xf32>
    %41 = vector.shape_cast %40 : vector<2x8xf32> to vector<2x8x1xf32>
    %42 = tpu.reciprocal %41 {approx = true} : vector<2x8x1xf32> -> vector<2x8x1xf32>
    %43 = vector.broadcast %42 : vector<2x8x1xf32> to vector<2x8x8xf32>
    %44 = arith.mulf %39, %43 : vector<2x8x8xf32>
    %45 = arith.truncf %44 : vector<2x8x8xf32> to vector<2x8x8xbf16>
    "tpu.trace_start"() <{level = 10 : i32, message = "bqk,bkd->bqd"}> : () -> ()
    %cst_17 = arith.constant dense<0.000000e+00> : vector<2x8x8xf32>
    %46 = tpu.matmul %45, %31, %cst_17 {dimension_numbers = #tpu.dot_dimension_numbers<[2], [1], [1], [2], [0, 0, 0, 1, 1, 2], [0], [0]>} : vector<2x8x8xbf16>, vector<2x8x8xbf16>, vector<2x8x8xf32> -> vector<2x8x8xf32>
    "tpu.trace_stop"() : () -> ()
    %47 = vector.shape_cast %46 : vector<2x8x8xf32> to vector<16x8xf32>
    %48 = arith.truncf %47 : vector<16x8xf32> to vector<16x8xbf16>
    %c0_18 = arith.constant 0 : index
    %c0_19 = arith.constant 0 : index
    %49 = vector.load %arg10[%c0_18, %c0_19] : memref<16x32xbf16, #tpu.memory_space<vmem>>, vector<16x8xbf16>
    tpu.vector_store %arg10[%c0_18, %c0_19], %48 {strides = array<i32>} : memref<16x32xbf16, #tpu.memory_space<vmem>>, vector<16x8xbf16>,
    %50 = vector.extract_strided_slice %15 {offsets = [0, 0, 8], sizes = [2, 8, 8], strides = [1, 1, 1]} : vector<2x8x32xf32> to vector<2x8x8xf32>
    %51 = arith.truncf %50 : vector<2x8x8xf32> to vector<2x8x8xbf16>
    %52 = vector.extract_strided_slice %20 {offsets = [0, 0, 8], sizes = [2, 8, 8], strides = [1, 1, 1]} : vector<2x8x32xf32> to vector<2x8x8xf32>
    %53 = arith.truncf %52 : vector<2x8x8xf32> to vector<2x8x8xbf16>
    %54 = vector.extract_strided_slice %25 {offsets = [0, 0, 8], sizes = [2, 8, 8], strides = [1, 1, 1]} : vector<2x8x32xf32> to vector<2x8x8xf32>
    %55 = arith.truncf %54 : vector<2x8x8xf32> to vector<2x8x8xbf16>
    "tpu.trace_start"() <{level = 10 : i32, message = "bqd,bkd->bqk"}> : () -> ()
    %cst_20 = arith.constant dense<0.000000e+00> : vector<2x8x8xf32>
    %56 = tpu.matmul %51, %53, %cst_20 {dimension_numbers = #tpu.dot_dimension_numbers<[2], [2], [1], [1], [0, 0, 0, 1, 1, 1], [0], [0]>} : vector<2x8x8xbf16>, vector<2x8x8xbf16>, vector<2x8x8xf32> -> vector<2x8x8xf32>
    "tpu.trace_stop"() : () -> ()
    %57 = vector.broadcast %7 : vector<2x1x8xf32> to vector<2x8x8xf32>
    %58 = arith.addf %56, %57 : vector<2x8x8xf32>
    %cst_21 = arith.constant dense<0xFF800000> : vector<2x8xf32>
    %59 = vector.multi_reduction <maximumf>, %58, %cst_21 [2] : vector<2x8x8xf32> to vector<2x8xf32>
    %60 = vector.shape_cast %59 : vector<2x8xf32> to vector<2x8x1xf32>
    %61 = vector.broadcast %60 : vector<2x8x1xf32> to vector<2x8x8xf32>
    %62 = arith.subf %58, %61 : vector<2x8x8xf32>
    %63 = math.exp %62 : vector<2x8x8xf32>
    %cst_22 = arith.constant dense<0.000000e+00> : vector<2x8xf32>
    %64 = vector.multi_reduction <add>, %63, %cst_22 [2] : vector<2x8x8xf32> to vector<2x8xf32>
    %65 = vector.shape_cast %64 : vector<2x8xf32> to vector<2x8x1xf32>
    %66 = tpu.reciprocal %65 {approx = true} : vector<2x8x1xf32> -> vector<2x8x1xf32>
    %67 = vector.broadcast %66 : vector<2x8x1xf32> to vector<2x8x8xf32>
    %68 = arith.mulf %63, %67 : vector<2x8x8xf32>
    %69 = arith.truncf %68 : vector<2x8x8xf32> to vector<2x8x8xbf16>
    "tpu.trace_start"() <{level = 10 : i32, message = "bqk,bkd->bqd"}> : () -> ()
    %cst_23 = arith.constant dense<0.000000e+00> : vector<2x8x8xf32>
    %70 = tpu.matmul %69, %55, %cst_23 {dimension_numbers = #tpu.dot_dimension_numbers<[2], [1], [1], [2], [0, 0, 0, 1, 1, 2], [0], [0]>} : vector<2x8x8xbf16>, vector<2x8x8xbf16>, vector<2x8x8xf32> -> vector<2x8x8xf32>
    "tpu.trace_stop"() : () -> ()
    %71 = vector.shape_cast %70 : vector<2x8x8xf32> to vector<16x8xf32>
    %72 = arith.truncf %71 : vector<16x8xf32> to vector<16x8xbf16>
    %c0_24 = arith.constant 0 : index
    %c8 = arith.constant 8 : index
    %73 = vector.load %arg10[%c0_24, %c8] : memref<16x32xbf16, #tpu.memory_space<vmem>>, vector<16x8xbf16>
    tpu.vector_store %arg10[%c0_24, %c8], %72 {strides = array<i32>} : memref<16x32xbf16, #tpu.memory_space<vmem>>, vector<16x8xbf16>,
    %74 = vector.extract_strided_slice %15 {offsets = [0, 0, 16], sizes = [2, 8, 8], strides = [1, 1, 1]} : vector<2x8x32xf32> to vector<2x8x8xf32>
    %75 = arith.truncf %74 : vector<2x8x8xf32> to vector<2x8x8xbf16>
    %76 = vector.extract_strided_slice %20 {offsets = [0, 0, 16], sizes = [2, 8, 8], strides = [1, 1, 1]} : vector<2x8x32xf32> to vector<2x8x8xf32>
    %77 = arith.truncf %76 : vector<2x8x8xf32> to vector<2x8x8xbf16>
    %78 = vector.extract_strided_slice %25 {offsets = [0, 0, 16], sizes = [2, 8, 8], strides = [1, 1, 1]} : vector<2x8x32xf32> to vector<2x8x8xf32>
    %79 = arith.truncf %78 : vector<2x8x8xf32> to vector<2x8x8xbf16>
    "tpu.trace_start"() <{level = 10 : i32, message = "bqd,bkd->bqk"}> : () -> ()
    %cst_25 = arith.constant dense<0.000000e+00> : vector<2x8x8xf32>
    %80 = tpu.matmul %75, %77, %cst_25 {dimension_numbers = #tpu.dot_dimension_numbers<[2], [2], [1], [1], [0, 0, 0, 1, 1, 1], [0], [0]>} : vector<2x8x8xbf16>, vector<2x8x8xbf16>, vector<2x8x8xf32> -> vector<2x8x8xf32>
    "tpu.trace_stop"() : () -> ()
    %81 = vector.broadcast %7 : vector<2x1x8xf32> to vector<2x8x8xf32>
    %82 = arith.addf %80, %81 : vector<2x8x8xf32>
    %cst_26 = arith.constant dense<0xFF800000> : vector<2x8xf32>
    %83 = vector.multi_reduction <maximumf>, %82, %cst_26 [2] : vector<2x8x8xf32> to vector<2x8xf32>
    %84 = vector.shape_cast %83 : vector<2x8xf32> to vector<2x8x1xf32>
    %85 = vector.broadcast %84 : vector<2x8x1xf32> to vector<2x8x8xf32>
    %86 = arith.subf %82, %85 : vector<2x8x8xf32>
    %87 = math.exp %86 : vector<2x8x8xf32>
    %cst_27 = arith.constant dense<0.000000e+00> : vector<2x8xf32>
    %88 = vector.multi_reduction <add>, %87, %cst_27 [2] : vector<2x8x8xf32> to vector<2x8xf32>
    %89 = vector.shape_cast %88 : vector<2x8xf32> to vector<2x8x1xf32>
    %90 = tpu.reciprocal %89 {approx = true} : vector<2x8x1xf32> -> vector<2x8x1xf32>
    %91 = vector.broadcast %90 : vector<2x8x1xf32> to vector<2x8x8xf32>
    %92 = arith.mulf %87, %91 : vector<2x8x8xf32>
    %93 = arith.truncf %92 : vector<2x8x8xf32> to vector<2x8x8xbf16>
    "tpu.trace_start"() <{level = 10 : i32, message = "bqk,bkd->bqd"}> : () -> ()
    %cst_28 = arith.constant dense<0.000000e+00> : vector<2x8x8xf32>
    %94 = tpu.matmul %93, %79, %cst_28 {dimension_numbers = #tpu.dot_dimension_numbers<[2], [1], [1], [2], [0, 0, 0, 1, 1, 2], [0], [0]>} : vector<2x8x8xbf16>, vector<2x8x8xbf16>, vector<2x8x8xf32> -> vector<2x8x8xf32>
    "tpu.trace_stop"() : () -> ()
    %95 = vector.shape_cast %94 : vector<2x8x8xf32> to vector<16x8xf32>
    %96 = arith.truncf %95 : vector<16x8xf32> to vector<16x8xbf16>
    %c0_29 = arith.constant 0 : index
    %c16 = arith.constant 16 : index
    %97 = vector.load %arg10[%c0_29, %c16] : memref<16x32xbf16, #tpu.memory_space<vmem>>, vector<16x8xbf16>
    tpu.vector_store %arg10[%c0_29, %c16], %96 {strides = array<i32>} : memref<16x32xbf16, #tpu.memory_space<vmem>>, vector<16x8xbf16>,
    %98 = vector.extract_strided_slice %15 {offsets = [0, 0, 24], sizes = [2, 8, 8], strides = [1, 1, 1]} : vector<2x8x32xf32> to vector<2x8x8xf32>
    %99 = arith.truncf %98 : vector<2x8x8xf32> to vector<2x8x8xbf16>
    %100 = vector.extract_strided_slice %20 {offsets = [0, 0, 24], sizes = [2, 8, 8], strides = [1, 1, 1]} : vector<2x8x32xf32> to vector<2x8x8xf32>
    %101 = arith.truncf %100 : vector<2x8x8xf32> to vector<2x8x8xbf16>
    %102 = vector.extract_strided_slice %25 {offsets = [0, 0, 24], sizes = [2, 8, 8], strides = [1, 1, 1]} : vector<2x8x32xf32> to vector<2x8x8xf32>
    %103 = arith.truncf %102 : vector<2x8x8xf32> to vector<2x8x8xbf16>
    "tpu.trace_start"() <{level = 10 : i32, message = "bqd,bkd->bqk"}> : () -> ()
    %cst_30 = arith.constant dense<0.000000e+00> : vector<2x8x8xf32>
    %104 = tpu.matmul %99, %101, %cst_30 {dimension_numbers = #tpu.dot_dimension_numbers<[2], [2], [1], [1], [0, 0, 0, 1, 1, 1], [0], [0]>} : vector<2x8x8xbf16>, vector<2x8x8xbf16>, vector<2x8x8xf32> -> vector<2x8x8xf32>
    "tpu.trace_stop"() : () -> ()
    %105 = vector.broadcast %7 : vector<2x1x8xf32> to vector<2x8x8xf32>
    %106 = arith.addf %104, %105 : vector<2x8x8xf32>
    %cst_31 = arith.constant dense<0xFF800000> : vector<2x8xf32>
    %107 = vector.multi_reduction <maximumf>, %106, %cst_31 [2] : vector<2x8x8xf32> to vector<2x8xf32>
    %108 = vector.shape_cast %107 : vector<2x8xf32> to vector<2x8x1xf32>
    %109 = vector.broadcast %108 : vector<2x8x1xf32> to vector<2x8x8xf32>
    %110 = arith.subf %106, %109 : vector<2x8x8xf32>
    %111 = math.exp %110 : vector<2x8x8xf32>
    %cst_32 = arith.constant dense<0.000000e+00> : vector<2x8xf32>
    %112 = vector.multi_reduction <add>, %111, %cst_32 [2] : vector<2x8x8xf32> to vector<2x8xf32>
    %113 = vector.shape_cast %112 : vector<2x8xf32> to vector<2x8x1xf32>
    %114 = tpu.reciprocal %113 {approx = true} : vector<2x8x1xf32> -> vector<2x8x1xf32>
    %115 = vector.broadcast %114 : vector<2x8x1xf32> to vector<2x8x8xf32>
    %116 = arith.mulf %111, %115 : vector<2x8x8xf32>
    %117 = arith.truncf %116 : vector<2x8x8xf32> to vector<2x8x8xbf16>
    "tpu.trace_start"() <{level = 10 : i32, message = "bqk,bkd->bqd"}> : () -> ()
    %cst_33 = arith.constant dense<0.000000e+00> : vector<2x8x8xf32>
    %118 = tpu.matmul %117, %103, %cst_33 {dimension_numbers = #tpu.dot_dimension_numbers<[2], [1], [1], [2], [0, 0, 0, 1, 1, 2], [0], [0]>} : vector<2x8x8xbf16>, vector<2x8x8xbf16>, vector<2x8x8xf32> -> vector<2x8x8xf32>
    "tpu.trace_stop"() : () -> ()
    %119 = vector.shape_cast %118 : vector<2x8x8xf32> to vector<16x8xf32>
    %120 = arith.truncf %119 : vector<16x8xf32> to vector<16x8xbf16>
    %c0_34 = arith.constant 0 : index
    %c24 = arith.constant 24 : index
    %121 = vector.load %arg10[%c0_34, %c24] : memref<16x32xbf16, #tpu.memory_space<vmem>>, vector<16x8xbf16>
    tpu.vector_store %arg10[%c0_34, %c24], %120 {strides = array<i32>} : memref<16x32xbf16, #tpu.memory_space<vmem>>, vector<16x8xbf16>,
    %c0_35 = arith.constant 0 : index
    %c0_36 = arith.constant 0 : index
    %122 = vector.load %arg10[%c0_35, %c0_36] : memref<16x32xbf16, #tpu.memory_space<vmem>>, vector<16x32xbf16>
    %c0_37 = arith.constant 0 : index
    %c0_38 = arith.constant 0 : index
    %123 = vector.load %arg4[%c0_37, %c0_38] : memref<32x32xbf16, #tpu.memory_space<vmem>>, vector<32x32xbf16>
    %cst_39 = arith.constant dense<0.000000e+00> : vector<16x32xf32>
    %124 = tpu.matmul %122, %123, %cst_39 {dimension_numbers = #tpu.dot_dimension_numbers<[1], [0], [0], [1], [0, 0, 1, 1], [], []>} : vector<16x32xbf16>, vector<32x32xbf16>, vector<16x32xf32> -> vector<16x32xf32>
    %c3 = arith.constant 3 : index
    %c0_40 = arith.constant 0 : index
    %125 = vector.load %arg7[%c3, %c0_40] : memref<9x32xf32, #tpu.memory_space<vmem>>, vector<1x32xf32>
    %126 = vector.broadcast %125 : vector<1x32xf32> to vector<16x32xf32>
    %127 = arith.addf %124, %126 : vector<16x32xf32>
    %128 = arith.addf %1, %127 : vector<16x32xf32>
    %c5 = arith.constant 5 : index
    %c0_41 = arith.constant 0 : index
    %129 = vector.load %arg7[%c5, %c0_41] : memref<9x32xf32, #tpu.memory_space<vmem>>, vector<1x32xf32>
    %c6 = arith.constant 6 : index
    %c0_42 = arith.constant 0 : index
    %130 = vector.load %arg7[%c6, %c0_42] : memref<9x32xf32, #tpu.memory_space<vmem>>, vector<1x32xf32>
    %cst_43 = arith.constant dense<0.000000e+00> : vector<16xf32>
    %131 = vector.multi_reduction <add>, %128, %cst_43 [1] : vector<16x32xf32> to vector<16xf32>
    %132 = vector.shape_cast %131 : vector<16xf32> to vector<16x1xf32>
    %cst_44 = arith.constant 3.200000e+01 : f32
    %133 = vector.broadcast %cst_44 : f32 to vector<16x1xf32>
    %134 = arith.divf %132, %133 : vector<16x1xf32>
    %135 = vector.broadcast %134 : vector<16x1xf32> to vector<16x32xf32>
    %136 = arith.subf %128, %135 : vector<16x32xf32>
    %137 = arith.mulf %136, %136 : vector<16x32xf32>
    %cst_45 = arith.constant dense<0.000000e+00> : vector<16xf32>
    %138 = vector.multi_reduction <add>, %137, %cst_45 [1] : vector<16x32xf32> to vector<16xf32>
    %139 = vector.shape_cast %138 : vector<16xf32> to vector<16x1xf32>
    %cst_46 = arith.constant 3.200000e+01 : f32
    %140 = vector.broadcast %cst_46 : f32 to vector<16x1xf32>
    %141 = arith.divf %139, %140 : vector<16x1xf32>
    %142 = vector.broadcast %134 : vector<16x1xf32> to vector<16x32xf32>
    %143 = arith.subf %128, %142 : vector<16x32xf32>
    %cst_47 = arith.constant 9.99999974E-6 : f32
    %144 = vector.broadcast %cst_47 : f32 to vector<16x1xf32>
    %145 = arith.addf %141, %144 : vector<16x1xf32>
    %146 = math.rsqrt %145 : vector<16x1xf32>
    %147 = vector.broadcast %146 : vector<16x1xf32> to vector<16x32xf32>
    %148 = arith.mulf %143, %147 : vector<16x32xf32>
    %149 = vector.broadcast %129 : vector<1x32xf32> to vector<16x32xf32>
    %150 = arith.mulf %148, %149 : vector<16x32xf32>
    %151 = vector.broadcast %130 : vector<1x32xf32> to vector<16x32xf32>
    %152 = arith.addf %150, %151 : vector<16x32xf32>
    %153 = arith.truncf %152 : vector<16x32xf32> to vector<16x32xbf16>
    %c0_48 = arith.constant 0 : index
    %c0_49 = arith.constant 0 : index
    %154 = vector.load %arg5[%c0_48, %c0_49] : memref<32x65xbf16, #tpu.memory_space<vmem>>, vector<32x65xbf16>
    %cst_50 = arith.constant dense<0.000000e+00> : vector<16x65xf32>
    %155 = tpu.matmul %153, %154, %cst_50 {dimension_numbers = #tpu.dot_dimension_numbers<[1], [0], [0], [1], [0, 0, 1, 1], [], []>} : vector<16x32xbf16>, vector<32x65xbf16>, vector<16x65xf32> -> vector<16x65xf32>
    %c0_51 = arith.constant 0 : index
    %c0_52 = arith.constant 0 : index
    %156 = vector.load %arg8[%c0_51, %c0_52] : memref<1x65xf32, #tpu.memory_space<vmem>>, vector<1x65xf32>
    %157 = vector.broadcast %156 : vector<1x65xf32> to vector<16x65xf32>
    %158 = arith.addf %155, %157 : vector<16x65xf32>
    %159 = vector.extract_strided_slice %158 {offsets = [0, 64], sizes = [16, 1], strides = [1, 1]} : vector<16x65xf32> to vector<16x1xf32>
    %160 = arith.negf %159 : vector<16x1xf32>
    %161 = math.exp %160 : vector<16x1xf32>
    %cst_53 = arith.constant 1.000000e+00 : f32
    %162 = vector.broadcast %cst_53 : f32 to vector<16x1xf32>
    %163 = arith.addf %162, %161 : vector<16x1xf32>
    %164 = arith.divf %162, %163 : vector<16x1xf32>
    %165 = vector.extract_strided_slice %158 {offsets = [0, 0], sizes = [16, 64], strides = [1, 1]} : vector<16x65xf32> to vector<16x64xf32>
    %166 = vector.broadcast %164 : vector<16x1xf32> to vector<16x64xf32>
    %167 = arith.mulf %165, %166 : vector<16x64xf32>
    %cst_54 = arith.constant 0.000000e+00 : f32
    %168 = vector.broadcast %cst_54 : f32 to vector<16x64xf32>
    %169 = arith.maximumf %167, %168 : vector<16x64xf32>
    %170 = arith.truncf %169 : vector<16x64xf32> to vector<16x64xbf16>
    %c0_55 = arith.constant 0 : index
    %c0_56 = arith.constant 0 : index
    %171 = vector.load %arg6[%c0_55, %c0_56] : memref<64x32xbf16, #tpu.memory_space<vmem>>, vector<64x32xbf16>
    %cst_57 = arith.constant dense<0.000000e+00> : vector<16x32xf32>
    %172 = tpu.matmul %170, %171, %cst_57 {dimension_numbers = #tpu.dot_dimension_numbers<[1], [0], [0], [1], [0, 0, 1, 1], [], []>} : vector<16x64xbf16>, vector<64x32xbf16>, vector<16x32xf32> -> vector<16x32xf32>
    %c4 = arith.constant 4 : index
    %c0_58 = arith.constant 0 : index
    %173 = vector.load %arg7[%c4, %c0_58] : memref<9x32xf32, #tpu.memory_space<vmem>>, vector<1x32xf32>
    %174 = vector.broadcast %173 : vector<1x32xf32> to vector<16x32xf32>
    %175 = arith.addf %172, %174 : vector<16x32xf32>
    %176 = arith.addf %152, %175 : vector<16x32xf32>
    %c7 = arith.constant 7 : index
    %c0_59 = arith.constant 0 : index
    %177 = vector.load %arg7[%c7, %c0_59] : memref<9x32xf32, #tpu.memory_space<vmem>>, vector<1x32xf32>
    %c8_60 = arith.constant 8 : index
    %c0_61 = arith.constant 0 : index
    %178 = vector.load %arg7[%c8_60, %c0_61] : memref<9x32xf32, #tpu.memory_space<vmem>>, vector<1x32xf32>
    %cst_62 = arith.constant dense<0.000000e+00> : vector<16xf32>
    %179 = vector.multi_reduction <add>, %176, %cst_62 [1] : vector<16x32xf32> to vector<16xf32>
    %180 = vector.shape_cast %179 : vector<16xf32> to vector<16x1xf32>
    %cst_63 = arith.constant 3.200000e+01 : f32
    %181 = vector.broadcast %cst_63 : f32 to vector<16x1xf32>
    %182 = arith.divf %180, %181 : vector<16x1xf32>
    %183 = vector.broadcast %182 : vector<16x1xf32> to vector<16x32xf32>
    %184 = arith.subf %176, %183 : vector<16x32xf32>
    %185 = arith.mulf %184, %184 : vector<16x32xf32>
    %cst_64 = arith.constant dense<0.000000e+00> : vector<16xf32>
    %186 = vector.multi_reduction <add>, %185, %cst_64 [1] : vector<16x32xf32> to vector<16xf32>
    %187 = vector.shape_cast %186 : vector<16xf32> to vector<16x1xf32>
    %cst_65 = arith.constant 3.200000e+01 : f32
    %188 = vector.broadcast %cst_65 : f32 to vector<16x1xf32>
    %189 = arith.divf %187, %188 : vector<16x1xf32>
    %190 = vector.broadcast %182 : vector<16x1xf32> to vector<16x32xf32>
    %191 = arith.subf %176, %190 : vector<16x32xf32>
    %cst_66 = arith.constant 9.99999974E-6 : f32
    %192 = vector.broadcast %cst_66 : f32 to vector<16x1xf32>
    %193 = arith.addf %189, %192 : vector<16x1xf32>
    %194 = math.rsqrt %193 : vector<16x1xf32>
    %195 = vector.broadcast %194 : vector<16x1xf32> to vector<16x32xf32>
    %196 = arith.mulf %191, %195 : vector<16x32xf32>
    %197 = vector.broadcast %177 : vector<1x32xf32> to vector<16x32xf32>
    %198 = arith.mulf %196, %197 : vector<16x32xf32>
    %199 = vector.broadcast %178 : vector<1x32xf32> to vector<16x32xf32>
    %200 = arith.addf %198, %199 : vector<16x32xf32>
    %201 = vector.shape_cast %200 : vector<16x32xf32> to vector<2x256xf32>
    %c0_67 = arith.constant 0 : index
    %c0_68 = arith.constant 0 : index
    %202 = vector.load %arg9[%c0_67, %c0_68] : memref<2x256xf32, #tpu.memory_space<vmem>>, vector<2x256xf32>
    tpu.vector_store %arg9[%c0_67, %c0_68], %201 {strides = array<i32>} : memref<2x256xf32, #tpu.memory_space<vmem>>, vector<2x256xf32>,
    return
  }
  func.func @transform_0(%arg0: i32) -> (i32, i32, i32) {
    %c0_i32 = arith.constant 0 : i32
    %c0_i32_0 = arith.constant 0 : i32
    %c0_i32_1 = arith.constant 0 : i32
    return %arg0, %c0_i32, %c0_i32_0 : i32, i32, i32
  }
  func.func @transform_1(%arg0: i32) -> (i32, i32, i32) {
    %c0_i32 = arith.constant 0 : i32
    %c0_i32_0 = arith.constant 0 : i32
    %c0_i32_1 = arith.constant 0 : i32
    return %arg0, %c0_i32, %c0_i32_0 : i32, i32, i32
  }
  func.func @transform_2(%arg0: i32) -> (i32, i32) {
    %c0_i32 = arith.constant 0 : i32
    %c0_i32_0 = arith.constant 0 : i32
    %c0_i32_1 = arith.constant 0 : i32
    return %c0_i32, %c0_i32_0 : i32, i32
  }
  func.func @transform_3(%arg0: i32) -> (i32, i32) {
    %c0_i32 = arith.constant 0 : i32
    %c0_i32_0 = arith.constant 0 : i32
    %c0_i32_1 = arith.constant 0 : i32
    return %c0_i32, %c0_i32_0 : i32, i32
  }
  func.func @transform_4(%arg0: i32) -> (i32, i32) {
    %c0_i32 = arith.constant 0 : i32
    %c0_i32_0 = arith.constant 0 : i32
    %c0_i32_1 = arith.constant 0 : i32
    return %c0_i32, %c0_i32_0 : i32, i32
  }
  func.func @transform_5(%arg0: i32) -> (i32, i32) {
    %c0_i32 = arith.constant 0 : i32
    %c0_i32_0 = arith.constant 0 : i32
    %c0_i32_1 = arith.constant 0 : i32
    return %c0_i32, %c0_i32_0 : i32, i32
  }
  func.func @transform_6(%arg0: i32) -> (i32, i32) {
    %c0_i32 = arith.constant 0 : i32
    %c0_i32_0 = arith.constant 0 : i32
    %c0_i32_1 = arith.constant 0 : i32
    return %c0_i32, %c0_i32_0 : i32, i32
  }
  func.func @transform_7(%arg0: i32) -> (i32, i32) {
    %c0_i32 = arith.constant 0 : i32
    %c0_i32_0 = arith.constant 0 : i32
    %c0_i32_1 = arith.constant 0 : i32
    return %c0_i32, %c0_i32_0 : i32, i32
  }
  func.func @transform_8(%arg0: i32) -> (i32, i32) {
    %c0_i32 = arith.constant 0 : i32
    %c0_i32_0 = arith.constant 0 : i32
    return %arg0, %c0_i32 : i32, i32
  }
}

module attributes {stable_mosaic.version = 11 : i64} {
  func.func @kernel(%arg0: i32, %arg1: memref<2x8x32xf32, #tpu.memory_space<vmem>>, %arg2: memref<2x1x8xf32, #tpu.memory_space<vmem>>, %arg3: memref<32x96xbf16, #tpu.memory_space<vmem>>, %arg4: memref<32x32xbf16, #tpu.memory_space<vmem>>, %arg5: memref<32x65xbf16, #tpu.memory_space<vmem>>, %arg6: memref<64x32xbf16, #tpu.memory_space<vmem>>, %arg7: memref<9x32xf32, #tpu.memory_space<vmem>>, %arg8: memref<1x65xf32, #tpu.memory_space<vmem>>, %arg9: memref<2x8x32xf32, #tpu.memory_space<vmem>>, %arg10: memref<16x32xbf16, #tpu.memory_space<vmem>>) attributes {dimension_semantics = [#tpu.dimension_semantics<parallel>], iteration_bounds = array<i64: 1>, scalar_prefetch = 0 : i64, scratch_operands = 1 : i64, tpu.core_type = #tpu.core_type<tc>, window_params = [{transform_indices = @transform_0, window_bounds = array<i64: 2, 8, 32>}, {transform_indices = @transform_1, window_bounds = array<i64: 2, 1, 8>}, {pipeline_mode = #tpu.pipeline_mode<synchronous>, transform_indices = @transform_2, window_bounds = array<i64: 32, 96>}, {pipeline_mode = #tpu.pipeline_mode<synchronous>, transform_indices = @transform_3, window_bounds = array<i64: 32, 32>}, {pipeline_mode = #tpu.pipeline_mode<synchronous>, transform_indices = @transform_4, window_bounds = array<i64: 32, 65>}, {pipeline_mode = #tpu.pipeline_mode<synchronous>, transform_indices = @transform_5, window_bounds = array<i64: 64, 32>}, {pipeline_mode = #tpu.pipeline_mode<synchronous>, transform_indices = @transform_6, window_bounds = array<i64: 9, 32>}, {pipeline_mode = #tpu.pipeline_mode<synchronous>, transform_indices = @transform_7, window_bounds = array<i64: 1, 65>}, {transform_indices = @transform_8, window_bounds = array<i64: 2, 8, 32>}]} {
    %c0 = arith.constant 0 : index
    %c0_0 = arith.constant 0 : index
    %c0_1 = arith.constant 0 : index
    %0 = vector.load %arg1[%c0, %c0_0, %c0_1] : memref<2x8x32xf32, #tpu.memory_space<vmem>>, vector<2x8x32xf32>
    %1 = vector.shape_cast %0 : vector<2x8x32xf32> to vector<16x32xf32>
    %c0_2 = arith.constant 0 : index
    %c0_3 = arith.constant 0 : index
    %c0_4 = arith.constant 0 : index
    %2 = vector.load %arg2[%c0_2, %c0_3, %c0_4] : memref<2x1x8xf32, #tpu.memory_space<vmem>>, vector<2x1x8xf32>
    %cst = arith.constant 0.000000e+00 : f32
    %3 = vector.broadcast %cst : f32 to vector<2x1x8xf32>
    %4 = arith.cmpf ogt, %2, %3 : vector<2x1x8xf32>
    %cst_5 = arith.constant 0.000000e+00 : f32
    %cst_6 = arith.constant -1.000000e+09 : f32
    %5 = vector.broadcast %cst_5 : f32 to vector<2x1x8xf32>
    %6 = vector.broadcast %cst_6 : f32 to vector<2x1x8xf32>
    %7 = arith.select %4, %5, %6 : vector<2x1x8xi1>, vector<2x1x8xf32>
    %8 = arith.truncf %1 : vector<16x32xf32> to vector<16x32xbf16>
    %c0_7 = arith.constant 0 : index
    %c0_8 = arith.constant 0 : index
    %9 = vector.load %arg3[%c0_7, %c0_8] : memref<32x96xbf16, #tpu.memory_space<vmem>>, vector<32x96xbf16>
    %cst_9 = arith.constant dense<0.000000e+00> : vector<16x96xf32>
    %10 = tpu.matmul %8, %9, %cst_9 {dimension_numbers = #tpu.dot_dimension_numbers<[1], [0], [0], [1], [0, 0, 1, 1], [], []>} : vector<16x32xbf16>, vector<32x96xbf16>, vector<16x96xf32> -> vector<16x96xf32>
    %11 = vector.extract_strided_slice %10 {offsets = [0, 0], sizes = [16, 32], strides = [1, 1]} : vector<16x96xf32> to vector<16x32xf32>
    %c0_10 = arith.constant 0 : index
    %c0_11 = arith.constant 0 : index
    %12 = vector.load %arg7[%c0_10, %c0_11] : memref<9x32xf32, #tpu.memory_space<vmem>>, vector<1x32xf32>
    %13 = vector.broadcast %12 : vector<1x32xf32> to vector<16x32xf32>
    %14 = arith.addf %11, %13 : vector<16x32xf32>
    %15 = vector.shape_cast %14 : vector<16x32xf32> to vector<2x8x32xf32>
    %16 = vector.extract_strided_slice %10 {offsets = [0, 32], sizes = [16, 32], strides = [1, 1]} : vector<16x96xf32> to vector<16x32xf32>
    %c1 = arith.constant 1 : index
    %c0_12 = arith.constant 0 : index
    %17 = vector.load %arg7[%c1, %c0_12] : memref<9x32xf32, #tpu.memory_space<vmem>>, vector<1x32xf32>
    %18 = vector.broadcast %17 : vector<1x32xf32> to vector<16x32xf32>
    %19 = arith.addf %16, %18 : vector<16x32xf32>
    %20 = vector.shape_cast %19 : vector<16x32xf32> to vector<2x8x32xf32>
    %21 = vector.extract_strided_slice %10 {offsets = [0, 64], sizes = [16, 32], strides = [1, 1]} : vector<16x96xf32> to vector<16x32xf32>
    %c2 = arith.constant 2 : index
    %c0_13 = arith.constant 0 : index
    %22 = vector.load %arg7[%c2, %c0_13] : memref<9x32xf32, #tpu.memory_space<vmem>>, vector<1x32xf32>
    %23 = vector.broadcast %22 : vector<1x32xf32> to vector<16x32xf32>
    %24 = arith.addf %21, %23 : vector<16x32xf32>
    %25 = vector.shape_cast %24 : vector<16x32xf32> to vector<2x8x32xf32>
    %26 = vector.extract_strided_slice %15 {offsets = [0, 0, 0], sizes = [2, 8, 8], strides = [1, 1, 1]} : vector<2x8x32xf32> to vector<2x8x8xf32>
    %27 = arith.truncf %26 : vector<2x8x8xf32> to vector<2x8x8xbf16>
    %28 = vector.extract_strided_slice %20 {offsets = [0, 0, 0], sizes = [2, 8, 8], strides = [1, 1, 1]} : vector<2x8x32xf32> to vector<2x8x8xf32>
    %29 = arith.truncf %28 : vector<2x8x8xf32> to vector<2x8x8xbf16>
    %30 = vector.extract_strided_slice %25 {offsets = [0, 0, 0], sizes = [2, 8, 8], strides = [1, 1, 1]} : vector<2x8x32xf32> to vector<2x8x8xf32>
    %31 = arith.truncf %30 : vector<2x8x8xf32> to vector<2x8x8xbf16>
    "tpu.trace_start"() <{level = 10 : i32, message = "bqd,bkd->bqk"}> : () -> ()
    %cst_14 = arith.constant dense<0.000000e+00> : vector<2x8x8xf32>
    %32 = tpu.matmul %27, %29, %cst_14 {dimension_numbers = #tpu.dot_dimension_numbers<[2], [2], [1], [1], [0, 0, 0, 1, 1, 1], [0], [0]>} : vector<2x8x8xbf16>, vector<2x8x8xbf16>, vector<2x8x8xf32> -> vector<2x8x8xf32>
    "tpu.trace_stop"() : () -> ()
    %33 = vector.broadcast %7 : vector<2x1x8xf32> to vector<2x8x8xf32>
    %34 = arith.addf %32, %33 : vector<2x8x8xf32>
    %cst_15 = arith.constant dense<0xFF800000> : vector<2x8xf32>
    %35 = vector.multi_reduction <maximumf>, %34, %cst_15 [2] : vector<2x8x8xf32> to vector<2x8xf32>
    %36 = vector.shape_cast %35 : vector<2x8xf32> to vector<2x8x1xf32>
    %37 = vector.broadcast %36 : vector<2x8x1xf32> to vector<2x8x8xf32>
    %38 = arith.subf %34, %37 : vector<2x8x8xf32>
    %39 = math.exp %38 : vector<2x8x8xf32>
    %cst_16 = arith.constant dense<0.000000e+00> : vector<2x8xf32>
    %40 = vector.multi_reduction <add>, %39, %cst_16 [2] : vector<2x8x8xf32> to vector<2x8xf32>
    %41 = vector.shape_cast %40 : vector<2x8xf32> to vector<2x8x1xf32>
    %42 = tpu.reciprocal %41 {approx = true} : vector<2x8x1xf32> -> vector<2x8x1xf32>
    %43 = vector.broadcast %42 : vector<2x8x1xf32> to vector<2x8x8xf32>
    %44 = arith.mulf %39, %43 : vector<2x8x8xf32>
    %45 = arith.truncf %44 : vector<2x8x8xf32> to vector<2x8x8xbf16>
    "tpu.trace_start"() <{level = 10 : i32, message = "bqk,bkd->bqd"}> : () -> ()
    %cst_17 = arith.constant dense<0.000000e+00> : vector<2x8x8xf32>
    %46 = tpu.matmul %45, %31, %cst_17 {dimension_numbers = #tpu.dot_dimension_numbers<[2], [1], [1], [2], [0, 0, 0, 1, 1, 2], [0], [0]>} : vector<2x8x8xbf16>, vector<2x8x8xbf16>, vector<2x8x8xf32> -> vector<2x8x8xf32>
    "tpu.trace_stop"() : () -> ()
    %47 = vector.shape_cast %46 : vector<2x8x8xf32> to vector<16x8xf32>
    %48 = arith.truncf %47 : vector<16x8xf32> to vector<16x8xbf16>
    %c0_18 = arith.constant 0 : index
    %c0_19 = arith.constant 0 : index
    %49 = vector.load %arg10[%c0_18, %c0_19] : memref<16x32xbf16, #tpu.memory_space<vmem>>, vector<16x8xbf16>
    tpu.vector_store %arg10[%c0_18, %c0_19], %48 {strides = array<i32>} : memref<16x32xbf16, #tpu.memory_space<vmem>>, vector<16x8xbf16>,
    %50 = vector.extract_strided_slice %15 {offsets = [0, 0, 8], sizes = [2, 8, 8], strides = [1, 1, 1]} : vector<2x8x32xf32> to vector<2x8x8xf32>
    %51 = arith.truncf %50 : vector<2x8x8xf32> to vector<2x8x8xbf16>
    %52 = vector.extract_strided_slice %20 {offsets = [0, 0, 8], sizes = [2, 8, 8], strides = [1, 1, 1]} : vector<2x8x32xf32> to vector<2x8x8xf32>
    %53 = arith.truncf %52 : vector<2x8x8xf32> to vector<2x8x8xbf16>
    %54 = vector.extract_strided_slice %25 {offsets = [0, 0, 8], sizes = [2, 8, 8], strides = [1, 1, 1]} : vector<2x8x32xf32> to vector<2x8x8xf32>
    %55 = arith.truncf %54 : vector<2x8x8xf32> to vector<2x8x8xbf16>
    "tpu.trace_start"() <{level = 10 : i32, message = "bqd,bkd->bqk"}> : () -> ()
    %cst_20 = arith.constant dense<0.000000e+00> : vector<2x8x8xf32>
    %56 = tpu.matmul %51, %53, %cst_20 {dimension_numbers = #tpu.dot_dimension_numbers<[2], [2], [1], [1], [0, 0, 0, 1, 1, 1], [0], [0]>} : vector<2x8x8xbf16>, vector<2x8x8xbf16>, vector<2x8x8xf32> -> vector<2x8x8xf32>
    "tpu.trace_stop"() : () -> ()
    %57 = vector.broadcast %7 : vector<2x1x8xf32> to vector<2x8x8xf32>
    %58 = arith.addf %56, %57 : vector<2x8x8xf32>
    %cst_21 = arith.constant dense<0xFF800000> : vector<2x8xf32>
    %59 = vector.multi_reduction <maximumf>, %58, %cst_21 [2] : vector<2x8x8xf32> to vector<2x8xf32>
    %60 = vector.shape_cast %59 : vector<2x8xf32> to vector<2x8x1xf32>
    %61 = vector.broadcast %60 : vector<2x8x1xf32> to vector<2x8x8xf32>
    %62 = arith.subf %58, %61 : vector<2x8x8xf32>
    %63 = math.exp %62 : vector<2x8x8xf32>
    %cst_22 = arith.constant dense<0.000000e+00> : vector<2x8xf32>
    %64 = vector.multi_reduction <add>, %63, %cst_22 [2] : vector<2x8x8xf32> to vector<2x8xf32>
    %65 = vector.shape_cast %64 : vector<2x8xf32> to vector<2x8x1xf32>
    %66 = tpu.reciprocal %65 {approx = true} : vector<2x8x1xf32> -> vector<2x8x1xf32>
    %67 = vector.broadcast %66 : vector<2x8x1xf32> to vector<2x8x8xf32>
    %68 = arith.mulf %63, %67 : vector<2x8x8xf32>
    %69 = arith.truncf %68 : vector<2x8x8xf32> to vector<2x8x8xbf16>
    "tpu.trace_start"() <{level = 10 : i32, message = "bqk,bkd->bqd"}> : () -> ()
    %cst_23 = arith.constant dense<0.000000e+00> : vector<2x8x8xf32>
    %70 = tpu.matmul %69, %55, %cst_23 {dimension_numbers = #tpu.dot_dimension_numbers<[2], [1], [1], [2], [0, 0, 0, 1, 1, 2], [0], [0]>} : vector<2x8x8xbf16>, vector<2x8x8xbf16>, vector<2x8x8xf32> -> vector<2x8x8xf32>
    "tpu.trace_stop"() : () -> ()
    %71 = vector.shape_cast %70 : vector<2x8x8xf32> to vector<16x8xf32>
    %72 = arith.truncf %71 : vector<16x8xf32> to vector<16x8xbf16>
    %c0_24 = arith.constant 0 : index
    %c8 = arith.constant 8 : index
    %73 = vector.load %arg10[%c0_24, %c8] : memref<16x32xbf16, #tpu.memory_space<vmem>>, vector<16x8xbf16>
    tpu.vector_store %arg10[%c0_24, %c8], %72 {strides = array<i32>} : memref<16x32xbf16, #tpu.memory_space<vmem>>, vector<16x8xbf16>,
    %74 = vector.extract_strided_slice %15 {offsets = [0, 0, 16], sizes = [2, 8, 8], strides = [1, 1, 1]} : vector<2x8x32xf32> to vector<2x8x8xf32>
    %75 = arith.truncf %74 : vector<2x8x8xf32> to vector<2x8x8xbf16>
    %76 = vector.extract_strided_slice %20 {offsets = [0, 0, 16], sizes = [2, 8, 8], strides = [1, 1, 1]} : vector<2x8x32xf32> to vector<2x8x8xf32>
    %77 = arith.truncf %76 : vector<2x8x8xf32> to vector<2x8x8xbf16>
    %78 = vector.extract_strided_slice %25 {offsets = [0, 0, 16], sizes = [2, 8, 8], strides = [1, 1, 1]} : vector<2x8x32xf32> to vector<2x8x8xf32>
    %79 = arith.truncf %78 : vector<2x8x8xf32> to vector<2x8x8xbf16>
    "tpu.trace_start"() <{level = 10 : i32, message = "bqd,bkd->bqk"}> : () -> ()
    %cst_25 = arith.constant dense<0.000000e+00> : vector<2x8x8xf32>
    %80 = tpu.matmul %75, %77, %cst_25 {dimension_numbers = #tpu.dot_dimension_numbers<[2], [2], [1], [1], [0, 0, 0, 1, 1, 1], [0], [0]>} : vector<2x8x8xbf16>, vector<2x8x8xbf16>, vector<2x8x8xf32> -> vector<2x8x8xf32>
    "tpu.trace_stop"() : () -> ()
    %81 = vector.broadcast %7 : vector<2x1x8xf32> to vector<2x8x8xf32>
    %82 = arith.addf %80, %81 : vector<2x8x8xf32>
    %cst_26 = arith.constant dense<0xFF800000> : vector<2x8xf32>
    %83 = vector.multi_reduction <maximumf>, %82, %cst_26 [2] : vector<2x8x8xf32> to vector<2x8xf32>
    %84 = vector.shape_cast %83 : vector<2x8xf32> to vector<2x8x1xf32>
    %85 = vector.broadcast %84 : vector<2x8x1xf32> to vector<2x8x8xf32>
    %86 = arith.subf %82, %85 : vector<2x8x8xf32>
    %87 = math.exp %86 : vector<2x8x8xf32>
    %cst_27 = arith.constant dense<0.000000e+00> : vector<2x8xf32>
    %88 = vector.multi_reduction <add>, %87, %cst_27 [2] : vector<2x8x8xf32> to vector<2x8xf32>
    %89 = vector.shape_cast %88 : vector<2x8xf32> to vector<2x8x1xf32>
    %90 = tpu.reciprocal %89 {approx = true} : vector<2x8x1xf32> -> vector<2x8x1xf32>
    %91 = vector.broadcast %90 : vector<2x8x1xf32> to vector<2x8x8xf32>
    %92 = arith.mulf %87, %91 : vector<2x8x8xf32>
    %93 = arith.truncf %92 : vector<2x8x8xf32> to vector<2x8x8xbf16>
    "tpu.trace_start"() <{level = 10 : i32, message = "bqk,bkd->bqd"}> : () -> ()
    %cst_28 = arith.constant dense<0.000000e+00> : vector<2x8x8xf32>
    %94 = tpu.matmul %93, %79, %cst_28 {dimension_numbers = #tpu.dot_dimension_numbers<[2], [1], [1], [2], [0, 0, 0, 1, 1, 2], [0], [0]>} : vector<2x8x8xbf16>, vector<2x8x8xbf16>, vector<2x8x8xf32> -> vector<2x8x8xf32>
    "tpu.trace_stop"() : () -> ()
    %95 = vector.shape_cast %94 : vector<2x8x8xf32> to vector<16x8xf32>
    %96 = arith.truncf %95 : vector<16x8xf32> to vector<16x8xbf16>
    %c0_29 = arith.constant 0 : index
    %c16 = arith.constant 16 : index
    %97 = vector.load %arg10[%c0_29, %c16] : memref<16x32xbf16, #tpu.memory_space<vmem>>, vector<16x8xbf16>
    tpu.vector_store %arg10[%c0_29, %c16], %96 {strides = array<i32>} : memref<16x32xbf16, #tpu.memory_space<vmem>>, vector<16x8xbf16>,
    %98 = vector.extract_strided_slice %15 {offsets = [0, 0, 24], sizes = [2, 8, 8], strides = [1, 1, 1]} : vector<2x8x32xf32> to vector<2x8x8xf32>
    %99 = arith.truncf %98 : vector<2x8x8xf32> to vector<2x8x8xbf16>
    %100 = vector.extract_strided_slice %20 {offsets = [0, 0, 24], sizes = [2, 8, 8], strides = [1, 1, 1]} : vector<2x8x32xf32> to vector<2x8x8xf32>
    %101 = arith.truncf %100 : vector<2x8x8xf32> to vector<2x8x8xbf16>
    %102 = vector.extract_strided_slice %25 {offsets = [0, 0, 24], sizes = [2, 8, 8], strides = [1, 1, 1]} : vector<2x8x32xf32> to vector<2x8x8xf32>
    %103 = arith.truncf %102 : vector<2x8x8xf32> to vector<2x8x8xbf16>
    "tpu.trace_start"() <{level = 10 : i32, message = "bqd,bkd->bqk"}> : () -> ()
    %cst_30 = arith.constant dense<0.000000e+00> : vector<2x8x8xf32>
    %104 = tpu.matmul %99, %101, %cst_30 {dimension_numbers = #tpu.dot_dimension_numbers<[2], [2], [1], [1], [0, 0, 0, 1, 1, 1], [0], [0]>} : vector<2x8x8xbf16>, vector<2x8x8xbf16>, vector<2x8x8xf32> -> vector<2x8x8xf32>
    "tpu.trace_stop"() : () -> ()
    %105 = vector.broadcast %7 : vector<2x1x8xf32> to vector<2x8x8xf32>
    %106 = arith.addf %104, %105 : vector<2x8x8xf32>
    %cst_31 = arith.constant dense<0xFF800000> : vector<2x8xf32>
    %107 = vector.multi_reduction <maximumf>, %106, %cst_31 [2] : vector<2x8x8xf32> to vector<2x8xf32>
    %108 = vector.shape_cast %107 : vector<2x8xf32> to vector<2x8x1xf32>
    %109 = vector.broadcast %108 : vector<2x8x1xf32> to vector<2x8x8xf32>
    %110 = arith.subf %106, %109 : vector<2x8x8xf32>
    %111 = math.exp %110 : vector<2x8x8xf32>
    %cst_32 = arith.constant dense<0.000000e+00> : vector<2x8xf32>
    %112 = vector.multi_reduction <add>, %111, %cst_32 [2] : vector<2x8x8xf32> to vector<2x8xf32>
    %113 = vector.shape_cast %112 : vector<2x8xf32> to vector<2x8x1xf32>
    %114 = tpu.reciprocal %113 {approx = true} : vector<2x8x1xf32> -> vector<2x8x1xf32>
    %115 = vector.broadcast %114 : vector<2x8x1xf32> to vector<2x8x8xf32>
    %116 = arith.mulf %111, %115 : vector<2x8x8xf32>
    %117 = arith.truncf %116 : vector<2x8x8xf32> to vector<2x8x8xbf16>
    "tpu.trace_start"() <{level = 10 : i32, message = "bqk,bkd->bqd"}> : () -> ()
    %cst_33 = arith.constant dense<0.000000e+00> : vector<2x8x8xf32>
    %118 = tpu.matmul %117, %103, %cst_33 {dimension_numbers = #tpu.dot_dimension_numbers<[2], [1], [1], [2], [0, 0, 0, 1, 1, 2], [0], [0]>} : vector<2x8x8xbf16>, vector<2x8x8xbf16>, vector<2x8x8xf32> -> vector<2x8x8xf32>
    "tpu.trace_stop"() : () -> ()
    %119 = vector.shape_cast %118 : vector<2x8x8xf32> to vector<16x8xf32>
    %120 = arith.truncf %119 : vector<16x8xf32> to vector<16x8xbf16>
    %c0_34 = arith.constant 0 : index
    %c24 = arith.constant 24 : index
    %121 = vector.load %arg10[%c0_34, %c24] : memref<16x32xbf16, #tpu.memory_space<vmem>>, vector<16x8xbf16>
    tpu.vector_store %arg10[%c0_34, %c24], %120 {strides = array<i32>} : memref<16x32xbf16, #tpu.memory_space<vmem>>, vector<16x8xbf16>,
    %c0_35 = arith.constant 0 : index
    %c0_36 = arith.constant 0 : index
    %122 = vector.load %arg10[%c0_35, %c0_36] : memref<16x32xbf16, #tpu.memory_space<vmem>>, vector<16x32xbf16>
    %c0_37 = arith.constant 0 : index
    %c0_38 = arith.constant 0 : index
    %123 = vector.load %arg4[%c0_37, %c0_38] : memref<32x32xbf16, #tpu.memory_space<vmem>>, vector<32x32xbf16>
    %cst_39 = arith.constant dense<0.000000e+00> : vector<16x32xf32>
    %124 = tpu.matmul %122, %123, %cst_39 {dimension_numbers = #tpu.dot_dimension_numbers<[1], [0], [0], [1], [0, 0, 1, 1], [], []>} : vector<16x32xbf16>, vector<32x32xbf16>, vector<16x32xf32> -> vector<16x32xf32>
    %c3 = arith.constant 3 : index
    %c0_40 = arith.constant 0 : index
    %125 = vector.load %arg7[%c3, %c0_40] : memref<9x32xf32, #tpu.memory_space<vmem>>, vector<1x32xf32>
    %126 = vector.broadcast %125 : vector<1x32xf32> to vector<16x32xf32>
    %127 = arith.addf %124, %126 : vector<16x32xf32>
    %128 = arith.addf %1, %127 : vector<16x32xf32>
    %c5 = arith.constant 5 : index
    %c0_41 = arith.constant 0 : index
    %129 = vector.load %arg7[%c5, %c0_41] : memref<9x32xf32, #tpu.memory_space<vmem>>, vector<1x32xf32>
    %c6 = arith.constant 6 : index
    %c0_42 = arith.constant 0 : index
    %130 = vector.load %arg7[%c6, %c0_42] : memref<9x32xf32, #tpu.memory_space<vmem>>, vector<1x32xf32>
    %cst_43 = arith.constant dense<0.000000e+00> : vector<16xf32>
    %131 = vector.multi_reduction <add>, %128, %cst_43 [1] : vector<16x32xf32> to vector<16xf32>
    %132 = vector.shape_cast %131 : vector<16xf32> to vector<16x1xf32>
    %cst_44 = arith.constant 3.200000e+01 : f32
    %133 = vector.broadcast %cst_44 : f32 to vector<16x1xf32>
    %134 = arith.divf %132, %133 : vector<16x1xf32>
    %135 = vector.broadcast %134 : vector<16x1xf32> to vector<16x32xf32>
    %136 = arith.subf %128, %135 : vector<16x32xf32>
    %137 = arith.mulf %136, %136 : vector<16x32xf32>
    %cst_45 = arith.constant dense<0.000000e+00> : vector<16xf32>
    %138 = vector.multi_reduction <add>, %137, %cst_45 [1] : vector<16x32xf32> to vector<16xf32>
    %139 = vector.shape_cast %138 : vector<16xf32> to vector<16x1xf32>
    %cst_46 = arith.constant 3.200000e+01 : f32
    %140 = vector.broadcast %cst_46 : f32 to vector<16x1xf32>
    %141 = arith.divf %139, %140 : vector<16x1xf32>
    %142 = vector.broadcast %134 : vector<16x1xf32> to vector<16x32xf32>
    %143 = arith.subf %128, %142 : vector<16x32xf32>
    %cst_47 = arith.constant 9.99999974E-6 : f32
    %144 = vector.broadcast %cst_47 : f32 to vector<16x1xf32>
    %145 = arith.addf %141, %144 : vector<16x1xf32>
    %146 = math.rsqrt %145 : vector<16x1xf32>
    %147 = vector.broadcast %146 : vector<16x1xf32> to vector<16x32xf32>
    %148 = arith.mulf %143, %147 : vector<16x32xf32>
    %149 = vector.broadcast %129 : vector<1x32xf32> to vector<16x32xf32>
    %150 = arith.mulf %148, %149 : vector<16x32xf32>
    %151 = vector.broadcast %130 : vector<1x32xf32> to vector<16x32xf32>
    %152 = arith.addf %150, %151 : vector<16x32xf32>
    %153 = arith.truncf %152 : vector<16x32xf32> to vector<16x32xbf16>
    %c0_48 = arith.constant 0 : index
    %c0_49 = arith.constant 0 : index
    %154 = vector.load %arg5[%c0_48, %c0_49] : memref<32x65xbf16, #tpu.memory_space<vmem>>, vector<32x65xbf16>
    %cst_50 = arith.constant dense<0.000000e+00> : vector<16x65xf32>
    %155 = tpu.matmul %153, %154, %cst_50 {dimension_numbers = #tpu.dot_dimension_numbers<[1], [0], [0], [1], [0, 0, 1, 1], [], []>} : vector<16x32xbf16>, vector<32x65xbf16>, vector<16x65xf32> -> vector<16x65xf32>
    %c0_51 = arith.constant 0 : index
    %c0_52 = arith.constant 0 : index
    %156 = vector.load %arg8[%c0_51, %c0_52] : memref<1x65xf32, #tpu.memory_space<vmem>>, vector<1x65xf32>
    %157 = vector.broadcast %156 : vector<1x65xf32> to vector<16x65xf32>
    %158 = arith.addf %155, %157 : vector<16x65xf32>
    %159 = vector.extract_strided_slice %158 {offsets = [0, 64], sizes = [16, 1], strides = [1, 1]} : vector<16x65xf32> to vector<16x1xf32>
    %160 = arith.negf %159 : vector<16x1xf32>
    %161 = math.exp %160 : vector<16x1xf32>
    %cst_53 = arith.constant 1.000000e+00 : f32
    %162 = vector.broadcast %cst_53 : f32 to vector<16x1xf32>
    %163 = arith.addf %162, %161 : vector<16x1xf32>
    %164 = arith.divf %162, %163 : vector<16x1xf32>
    %165 = vector.extract_strided_slice %158 {offsets = [0, 0], sizes = [16, 64], strides = [1, 1]} : vector<16x65xf32> to vector<16x64xf32>
    %166 = vector.broadcast %164 : vector<16x1xf32> to vector<16x64xf32>
    %167 = arith.mulf %165, %166 : vector<16x64xf32>
    %cst_54 = arith.constant 0.000000e+00 : f32
    %168 = vector.broadcast %cst_54 : f32 to vector<16x64xf32>
    %169 = arith.maximumf %167, %168 : vector<16x64xf32>
    %170 = arith.truncf %169 : vector<16x64xf32> to vector<16x64xbf16>
    %c0_55 = arith.constant 0 : index
    %c0_56 = arith.constant 0 : index
    %171 = vector.load %arg6[%c0_55, %c0_56] : memref<64x32xbf16, #tpu.memory_space<vmem>>, vector<64x32xbf16>
    %cst_57 = arith.constant dense<0.000000e+00> : vector<16x32xf32>
    %172 = tpu.matmul %170, %171, %cst_57 {dimension_numbers = #tpu.dot_dimension_numbers<[1], [0], [0], [1], [0, 0, 1, 1], [], []>} : vector<16x64xbf16>, vector<64x32xbf16>, vector<16x32xf32> -> vector<16x32xf32>
    %c4 = arith.constant 4 : index
    %c0_58 = arith.constant 0 : index
    %173 = vector.load %arg7[%c4, %c0_58] : memref<9x32xf32, #tpu.memory_space<vmem>>, vector<1x32xf32>
    %174 = vector.broadcast %173 : vector<1x32xf32> to vector<16x32xf32>
    %175 = arith.addf %172, %174 : vector<16x32xf32>
    %176 = arith.addf %152, %175 : vector<16x32xf32>
    %c7 = arith.constant 7 : index
    %c0_59 = arith.constant 0 : index
    %177 = vector.load %arg7[%c7, %c0_59] : memref<9x32xf32, #tpu.memory_space<vmem>>, vector<1x32xf32>
    %c8_60 = arith.constant 8 : index
    %c0_61 = arith.constant 0 : index
    %178 = vector.load %arg7[%c8_60, %c0_61] : memref<9x32xf32, #tpu.memory_space<vmem>>, vector<1x32xf32>
    %cst_62 = arith.constant dense<0.000000e+00> : vector<16xf32>
    %179 = vector.multi_reduction <add>, %176, %cst_62 [1] : vector<16x32xf32> to vector<16xf32>
    %180 = vector.shape_cast %179 : vector<16xf32> to vector<16x1xf32>
    %cst_63 = arith.constant 3.200000e+01 : f32
    %181 = vector.broadcast %cst_63 : f32 to vector<16x1xf32>
    %182 = arith.divf %180, %181 : vector<16x1xf32>
    %183 = vector.broadcast %182 : vector<16x1xf32> to vector<16x32xf32>
    %184 = arith.subf %176, %183 : vector<16x32xf32>
    %185 = arith.mulf %184, %184 : vector<16x32xf32>
    %cst_64 = arith.constant dense<0.000000e+00> : vector<16xf32>
    %186 = vector.multi_reduction <add>, %185, %cst_64 [1] : vector<16x32xf32> to vector<16xf32>
    %187 = vector.shape_cast %186 : vector<16xf32> to vector<16x1xf32>
    %cst_65 = arith.constant 3.200000e+01 : f32
    %188 = vector.broadcast %cst_65 : f32 to vector<16x1xf32>
    %189 = arith.divf %187, %188 : vector<16x1xf32>
    %190 = vector.broadcast %182 : vector<16x1xf32> to vector<16x32xf32>
    %191 = arith.subf %176, %190 : vector<16x32xf32>
    %cst_66 = arith.constant 9.99999974E-6 : f32
    %192 = vector.broadcast %cst_66 : f32 to vector<16x1xf32>
    %193 = arith.addf %189, %192 : vector<16x1xf32>
    %194 = math.rsqrt %193 : vector<16x1xf32>
    %195 = vector.broadcast %194 : vector<16x1xf32> to vector<16x32xf32>
    %196 = arith.mulf %191, %195 : vector<16x32xf32>
    %197 = vector.broadcast %177 : vector<1x32xf32> to vector<16x32xf32>
    %198 = arith.mulf %196, %197 : vector<16x32xf32>
    %199 = vector.broadcast %178 : vector<1x32xf32> to vector<16x32xf32>
    %200 = arith.addf %198, %199 : vector<16x32xf32>
    %201 = vector.shape_cast %200 : vector<16x32xf32> to vector<2x8x32xf32>
    %c0_67 = arith.constant 0 : index
    %c0_68 = arith.constant 0 : index
    %c0_69 = arith.constant 0 : index
    %202 = vector.load %arg9[%c0_67, %c0_68, %c0_69] : memref<2x8x32xf32, #tpu.memory_space<vmem>>, vector<2x8x32xf32>
    tpu.vector_store %arg9[%c0_67, %c0_68, %c0_69], %201 {strides = array<i32>} : memref<2x8x32xf32, #tpu.memory_space<vmem>>, vector<2x8x32xf32>,
    return
  }
  func.func @transform_0(%arg0: i32) -> (i32, i32, i32) {
    %c0_i32 = arith.constant 0 : i32
    %c0_i32_0 = arith.constant 0 : i32
    %c0_i32_1 = arith.constant 0 : i32
    return %arg0, %c0_i32, %c0_i32_0 : i32, i32, i32
  }
  func.func @transform_1(%arg0: i32) -> (i32, i32, i32) {
    %c0_i32 = arith.constant 0 : i32
    %c0_i32_0 = arith.constant 0 : i32
    %c0_i32_1 = arith.constant 0 : i32
    return %arg0, %c0_i32, %c0_i32_0 : i32, i32, i32
  }
  func.func @transform_2(%arg0: i32) -> (i32, i32) {
    %c0_i32 = arith.constant 0 : i32
    %c0_i32_0 = arith.constant 0 : i32
    %c0_i32_1 = arith.constant 0 : i32
    return %c0_i32, %c0_i32_0 : i32, i32
  }
  func.func @transform_3(%arg0: i32) -> (i32, i32) {
    %c0_i32 = arith.constant 0 : i32
    %c0_i32_0 = arith.constant 0 : i32
    %c0_i32_1 = arith.constant 0 : i32
    return %c0_i32, %c0_i32_0 : i32, i32
  }
  func.func @transform_4(%arg0: i32) -> (i32, i32) {
    %c0_i32 = arith.constant 0 : i32
    %c0_i32_0 = arith.constant 0 : i32
    %c0_i32_1 = arith.constant 0 : i32
    return %c0_i32, %c0_i32_0 : i32, i32
  }
  func.func @transform_5(%arg0: i32) -> (i32, i32) {
    %c0_i32 = arith.constant 0 : i32
    %c0_i32_0 = arith.constant 0 : i32
    %c0_i32_1 = arith.constant 0 : i32
    return %c0_i32, %c0_i32_0 : i32, i32
  }
  func.func @transform_6(%arg0: i32) -> (i32, i32) {
    %c0_i32 = arith.constant 0 : i32
    %c0_i32_0 = arith.constant 0 : i32
    %c0_i32_1 = arith.constant 0 : i32
    return %c0_i32, %c0_i32_0 : i32, i32
  }
  func.func @transform_7(%arg0: i32) -> (i32, i32) {
    %c0_i32 = arith.constant 0 : i32
    %c0_i32_0 = arith.constant 0 : i32
    %c0_i32_1 = arith.constant 0 : i32
    return %c0_i32, %c0_i32_0 : i32, i32
  }
  func.func @transform_8(%arg0: i32) -> (i32, i32, i32) {
    %c0_i32 = arith.constant 0 : i32
    %c0_i32_0 = arith.constant 0 : i32
    %c0_i32_1 = arith.constant 0 : i32
    return %arg0, %c0_i32, %c0_i32_0 : i32, i32, i32
  }
}

</mosaic_0001>

<llo_original>
// kernel: tpu_custom_call.1
$region0: #{tpu_custom_call.1}
  #allocation0 [shape = 'u32[]', space=smem, size = 0x4, offset = 0x4, fixed_abs, tag = 'smem constant byte address 0x4 - core index']
  #allocation1 [shape = 'u32[144,128]{1,0:T(1,128)}', space=vmem, size = 0x12000, scoped, tag = 'internal scratch']
  #allocation2 [shape = 'bf16[16,32]{1,0:T(16,128)(2,1)}', space=vmem, size = 0x1000, scoped, tag = 'scratch operand']
  %s0 = inlined_call_operand.vmem [shape: f32[2,8,32], index: 0, kind: input, shape index: {}]
  %s1 = inlined_call_operand.vmem [shape: f32[2,1,8], index: 1, kind: input, shape index: {}]
  %s2 = inlined_call_operand.vmem [shape: bf16[32,96], index: 2, kind: input, shape index: {}]
  %s3 = inlined_call_operand.vmem [shape: bf16[32,32], index: 3, kind: input, shape index: {}]
  %s4 = inlined_call_operand.hbm [shape: bf16[32,65], index: 4, kind: input, shape index: {}]
  %s5 = inlined_call_operand.vmem [shape: bf16[64,32], index: 5, kind: input, shape index: {}]
  %s6 = inlined_call_operand.hbm [shape: f32[9,32], index: 6, kind: input, shape index: {}]
  %s7 = inlined_call_operand.vmem [shape: f32[1,65], index: 7, kind: input, shape index: {}]
  %s8 = inlined_call_operand.hbm [shape: f32[2,8,32], index: 8, kind: output, shape index: {}]
  %s9 = sld [smem:[#allocation0]]
  $region50: #{tpu_custom_call.1} parent=0
    _
  %s11 = ssub.s32 1, %s9
  %s12 = scalar_select 0, %s11, %s9
  $region1: #{tpu_custom_call.1} parent=0
    #allocation3 [shape = 'u8[8192]{0}', space=vmem, size = 0x2000, scoped, tag = 'input window, operand 4, single buffered']
    #allocation4 [shape = 's32[1]{0}', space=sflag, size = 0x4, scoped, tag = 'scoped memory for tpu_custom_call.1']
    #allocation5 [shape = 's32[1]{0}', space=sflag, size = 0x4, scoped, tag = 'scoped memory for tpu_custom_call.1']
    #allocation6 [shape = 'u8[8192]{0}', space=vmem, size = 0x2000, scoped, tag = 'input window, operand 6, single buffered']
    #allocation7 [shape = 's32[1]{0}', space=sflag, size = 0x4, scoped, tag = 'scoped memory for tpu_custom_call.1']
    #allocation8 [shape = 'u8[8192]{0}', space=vmem, size = 0x2000, scoped, tag = 'output window, operand 0, single buffered']
    %13 = vsyncpa [#allocation4], 0
    %14 = vsyncpa [#allocation7], 0
    %15 = vsyncpa [#allocation5], 0
    // Predicated region
    $region2: #{tpu_custom_call.1} parent=1 // pred_check
      _
    $region3: #{tpu_custom_call.1} parent=1 // pred_check_branch
      %17 = sbr.rel (0) target = $region5
    $region4: #{tpu_custom_call.1} parent=1 // pred_region
      _
    $region5: #{tpu_custom_call.1} parent=1 // pred_fallthru
      _
    // Predicated region
    $region6: #{tpu_custom_call.1} parent=1 // pred_check
      _
    $region7: #{tpu_custom_call.1} parent=1 // pred_check_branch
      %19 = sbr.rel (0) target = $region9
    $region8: #{tpu_custom_call.1} parent=1 // pred_region
      _
    $region9: #{tpu_custom_call.1} parent=1 // pred_fallthru
      _
    // Predicated region
    $region10: #{tpu_custom_call.1} parent=1 // pred_check
      _
    $region11: #{tpu_custom_call.1} parent=1 // pred_check_branch
      %21 = sbr.rel (0) target = $region13
    $region12: #{tpu_custom_call.1} parent=1 // pred_region
      _
    $region13: #{tpu_custom_call.1} parent=1 // pred_fallthru
      _
    // Predicated region
    $region14: #{tpu_custom_call.1} parent=1 // pred_check
      _
    $region15: #{tpu_custom_call.1} parent=1 // pred_check_branch
      %23 = sbr.rel (0) target = $region17
    $region16: #{tpu_custom_call.1} parent=1 // pred_region
      _
    $region17: #{tpu_custom_call.1} parent=1 // pred_fallthru
      _
    // Predicated region
    $region18: #{tpu_custom_call.1} parent=1 // pred_check
      _
    $region19: #{tpu_custom_call.1} parent=1 // pred_check_branch
      %25 = sbr.rel (0) target = $region21
    $region20: #{tpu_custom_call.1} parent=1 // pred_region
      %s27 = ssub.s32 256, 256
      %28 = vsyncadd [#allocation4], %s27
      %s29 = sshll.u32 [#allocation3], 4
      %s30 = int_to_ptr.vmem [resolvable:$true] %s29
      %35 = dma.hbm_to_vmem [thread:$0]  %s4, 256, %s30, [#allocation4], 64, 64, 4
    $region21: #{tpu_custom_call.1} parent=1 // pred_fallthru
      _
    // Predicated region
    $region22: #{tpu_custom_call.1} parent=1 // pred_check
      _
    $region23: #{tpu_custom_call.1} parent=1 // pred_check_branch
      %37 = sbr.rel (0) target = $region25
    $region24: #{tpu_custom_call.1} parent=1 // pred_region
      _
    $region25: #{tpu_custom_call.1} parent=1 // pred_fallthru
      _
    // Predicated region
    $region26: #{tpu_custom_call.1} parent=1 // pred_check
      _
    $region27: #{tpu_custom_call.1} parent=1 // pred_check_branch
      %39 = sbr.rel (0) target = $region29
    $region28: #{tpu_custom_call.1} parent=1 // pred_region
      %s41 = ssub.s32 256, 256
      %42 = vsyncadd [#allocation7], %s41
      %s43 = sshll.u32 [#allocation6], 4
      %s44 = int_to_ptr.vmem [resolvable:$true] %s43
      %49 = dma.hbm_to_vmem [thread:$0]  %s6, 256, %s44, [#allocation7], 128, 128, 8
    $region29: #{tpu_custom_call.1} parent=1 // pred_fallthru
      _
    // Predicated region
    $region30: #{tpu_custom_call.1} parent=1 // pred_check
      _
    $region31: #{tpu_custom_call.1} parent=1 // pred_check_branch
      %51 = sbr.rel (0) target = $region33
    $region32: #{tpu_custom_call.1} parent=1 // pred_region
      _
    $region33: #{tpu_custom_call.1} parent=1 // pred_fallthru
      _
    // Predicated region
    $region34: #{tpu_custom_call.1} parent=1 // pred_check
      _
    $region35: #{tpu_custom_call.1} parent=1 // pred_check_branch
      %53 = sbr.rel (0) target = $region37
    $region36: #{tpu_custom_call.1} parent=1 // pred_region
      %54 = dma.done [#allocation4], 256
    $region37: #{tpu_custom_call.1} parent=1 // pred_fallthru
      _
    // Predicated region
    $region38: #{tpu_custom_call.1} parent=1 // pred_check
      _
    $region39: #{tpu_custom_call.1} parent=1 // pred_check_branch
      %56 = sbr.rel (0) target = $region41
    $region40: #{tpu_custom_call.1} parent=1 // pred_region
      %57 = dma.done [#allocation7], 256
    $region41: #{tpu_custom_call.1} parent=1 // pred_fallthru
      _
    %v59 = vld [vmem:[%s0] sm:$0xff]
    %v60 = vld [vmem:[%s0 + $0x8] sm:$0xff]
    %v61 = vld [vmem:[%s1] sm:$0x1]
    %v62 = vld [vmem:[%s1 + $0x1] sm:$0x1]
    %vm63 = vcmp.gt.f32.partialorder %v61, 0.0
    %vm64 = vcmp.gt.f32.partialorder %v62, 0.0
    %v65 = vsel %vm63, 0.0, -1e+09
    %v66 = vsel %vm64, 0.0, -1e+09
    %v67 = vpack.c.bf16 %v60, %v59
    %v68 = vld [vmem:[%s2] sm:$0xf]
    %v69 = vld [vmem:[%s2 + $0x4] sm:$0xf]
    %v70 = vld [vmem:[%s2 + $0x8] sm:$0xf]
    %v71 = vld [vmem:[%s2 + $0xc] sm:$0xf]
    %v76 = vunpack.c.l.b16 %v68
    %v77 = vunpack.c.l.b16 %v69
    %v78 = vunpack.c.l.b16 %v70
    %v79 = vunpack.c.l.b16 %v71
    %v80 = vpack.c.b16 %v77, %v76
    %v81 = vpack.c.b16 %v79, %v78
    %vm84 = vcmask 261120
    %v86 = vsel %vm84, %v67, 0
    %88 = vmatprep.subr.bf16.mxu0 0
    %89 = vmatpush1.bf16.msra.mxu0 %v80
    %90 = vmatprep.subr.bf16.mxu0 0
    %91 = vmatpush1.bf16.msra.mxu0 %v81
    %92 = vmatprep.subr.bf16.mxu0 0
    %93 = vmatpush1.bf16.msra.mxu0 0
    %94 = vmatprep.subr.bf16.mxu0 0
    %95 = vmatpush1.bf16.msra.mxu0 0
    %96 = vmatprep.subr.bf16.mxu0 0
    %97 = vmatpush1.bf16.msra.mxu0 0
    %98 = vmatprep.subr.bf16.mxu0 0
    %99 = vmatpush1.bf16.msra.mxu0 0
    %100 = vmatprep.subr.bf16.mxu0 0
    %101 = vmatpush1.bf16.msra.mxu0 0
    %102 = vmatprep.subr.bf16.mxu0 0
    %103 = vmatpush1.bf16.msra.mxu0 0
    %104 = vmatprep.subr.bf16.mxu0 0
    %105 = vmatpush1.bf16.msra.mxu0 0
    %106 = vmatprep.subr.bf16.mxu0 0
    %107 = vmatpush1.bf16.msra.mxu0 0
    %108 = vmatprep.subr.bf16.mxu0 0
    %109 = vmatpush1.bf16.msra.mxu0 0
    %110 = vmatprep.subr.bf16.mxu0 0
    %111 = vmatpush1.bf16.msra.mxu0 0
    %112 = vmatprep.subr.bf16.mxu0 0
    %113 = vmatpush1.bf16.msra.mxu0 0
    %114 = vmatprep.subr.bf16.mxu0 0
    %115 = vmatpush1.bf16.msra.mxu0 0
    %116 = vmatprep.subr.bf16.mxu0 0
    %117 = vmatpush1.bf16.msra.mxu0 0
    %118 = vmatprep.subr.bf16.mxu0 0
    %119 = vmatpush1.bf16.msra.mxu0 0
    %120 = vmatprep.mubr.bf16.mxu0 0
    %121 = vmatmul.mubr.bf16.gmra.mrb[0].mxu0 %v86
    %v122 = vpop.f32.mrb[0].mxu0
    %v123 = vadd.f32 0.0, %v122
    %v124 = vpop.f32.mrb[0].mxu0
    %v125 = vpop.f32.mrb[0].mxu0
    %v126 = vadd.f32 0.0, %v125
    %v127 = vpop.f32.mrb[0].mxu0
    %128 = vdwg.mxu0
    %v129 = vld [vmem:[#allocation6] sm:$0x1]
    %v130 = vlaneseq
    %v131 = vshrl.u32 %v130, 7
    %v132 = vsub.s32 0, %v131
    %v133 = vrot.slane %v129, %v132
    %v134 = vadd.f32 %v123, %v133
    %v135 = vadd.f32 %v126, %v133
    %v136 = vld [vmem:[#allocation6 + $0x1] sm:$0x1]
    %v137 = vlaneseq
    %v138 = vshrl.u32 %v137, 7
    %v139 = vsub.s32 0, %v138
    %v140 = vrot.slane %v136, %v139
    %142 = vrot.lane.b32.xlu0 %v140, 32
    %v143 = vpop.permute.xlu0 %142
    %v145 = vadd.f32 %v123, %v143
    %v146 = vadd.f32 %v126, %v143
    %v147 = vld [vmem:[#allocation6 + $0x2] sm:$0x1]
    %v148 = vlaneseq
    %v149 = vshrl.u32 %v148, 7
    %v150 = vsub.s32 0, %v149
    %v151 = vrot.slane %v147, %v150
    %153 = vrot.lane.b32.xlu0 %v151, 64
    %v154 = vpop.permute.xlu0 %153
    %v156 = vadd.f32 %v123, %v154
    %v157 = vadd.f32 %v126, %v154
    %v158 = vpack.c.bf16 %v134, %v134
    %v159 = vpack.c.bf16 %v135, %v135
    %v160 = vpack.c.bf16 %v145, %v145
    %v161 = vpack.c.bf16 %v146, %v146
    %v162 = vpack.c.bf16 %v156, %v156
    %v163 = vpack.c.bf16 %v157, %v157
    %v166 = vlaneseq
    %v167 = vshrl.u32 %v166, 7
    %v168 = vsub.s32 0, %v167
    %v169 = vrot.slane %v65, %v168
    %v170 = vlaneseq
    %v171 = vshrl.u32 %v170, 7
    %v172 = vsub.s32 0, %v171
    %v173 = vrot.slane %v66, %v172
    %177 = vrot.lane.b32.xlu0 %v160, 96
    %v178 = vpop.permute.xlu0 %177
    %vm179 = vcmask 64512
    %v181 = vsel %vm179, %v158, 0
    %v184 = vsel %vm179, %v178, 0
    %186 = vmatprep.subr.bf16.mxu0 0
    %187 = vmatpush1.bf16.xpose.msra.mxu0 %v184
    %188 = vmatprep.subr.bf16.mxu0 0
    %189 = vmatpush1.bf16.xpose.msra.mxu0 0
    %190 = vmatprep.subr.bf16.mxu0 0
    %191 = vmatpush1.bf16.xpose.msra.mxu0 0
    %192 = vmatprep.subr.bf16.mxu0 0
    %193 = vmatpush1.bf16.xpose.msra.mxu0 0
    %194 = vmatprep.subr.bf16.mxu0 0
    %195 = vmatpush1.bf16.xpose.msra.mxu0 0
    %196 = vmatprep.subr.bf16.mxu0 0
    %197 = vmatpush1.bf16.xpose.msra.mxu0 0
    %198 = vmatprep.subr.bf16.mxu0 0
    %199 = vmatpush1.bf16.xpose.msra.mxu0 0
    %200 = vmatprep.subr.bf16.mxu0 0
    %201 = vmatpush1.bf16.xpose.msra.mxu0 0
    %202 = vmatprep.subr.bf16.mxu0 0
    %203 = vmatpush1.bf16.xpose.msra.mxu0 0
    %204 = vmatprep.subr.bf16.mxu0 0
    %205 = vmatpush1.bf16.xpose.msra.mxu0 0
    %206 = vmatprep.subr.bf16.mxu0 0
    %207 = vmatpush1.bf16.xpose.msra.mxu0 0
    %208 = vmatprep.subr.bf16.mxu0 0
    %209 = vmatpush1.bf16.xpose.msra.mxu0 0
    %210 = vmatprep.subr.bf16.mxu0 0
    %211 = vmatpush1.bf16.xpose.msra.mxu0 0
    %212 = vmatprep.subr.bf16.mxu0 0
    %213 = vmatpush1.bf16.xpose.msra.mxu0 0
    %214 = vmatprep.subr.bf16.mxu0 0
    %215 = vmatpush1.bf16.xpose.msra.mxu0 0
    %216 = vmatprep.subr.bf16.mxu0 0
    %217 = vmatpush1.bf16.xpose.msra.mxu0 0
    %218 = vmatprep.mubr.bf16.mxu0 0
    %219 = vmatmul.mubr.bf16.gmra.mrb[0].mxu0 %v181
    %v220 = vpop.f32.mrb[0].mxu0
    %v221 = vadd.f32 %v169, %v220
    %v222 = vpop.f32.mrb[0].mxu0
    %v223 = vpop.f32.mrb[0].mxu0
    %v224 = vpop.f32.mrb[0].mxu0
    %225 = vdwg.mxu0
    %227 = vrot.lane.b32.xlu0 %v161, 96
    %v228 = vpop.permute.xlu0 %227
    %v230 = vsel %vm179, %v159, 0
    %v233 = vsel %vm179, %v228, 0
    %235 = vmatprep.subr.bf16.mxu0 0
    %236 = vmatpush1.bf16.xpose.msra.mxu0 %v233
    %237 = vmatprep.subr.bf16.mxu0 0
    %238 = vmatpush1.bf16.xpose.msra.mxu0 0
    %239 = vmatprep.subr.bf16.mxu0 0
    %240 = vmatpush1.bf16.xpose.msra.mxu0 0
    %241 = vmatprep.subr.bf16.mxu0 0
    %242 = vmatpush1.bf16.xpose.msra.mxu0 0
    %243 = vmatprep.subr.bf16.mxu0 0
    %244 = vmatpush1.bf16.xpose.msra.mxu0 0
    %245 = vmatprep.subr.bf16.mxu0 0
    %246 = vmatpush1.bf16.xpose.msra.mxu0 0
    %247 = vmatprep.subr.bf16.mxu0 0
    %248 = vmatpush1.bf16.xpose.msra.mxu0 0
    %249 = vmatprep.subr.bf16.mxu0 0
    %250 = vmatpush1.bf16.xpose.msra.mxu0 0
    %251 = vmatprep.subr.bf16.mxu0 0
    %252 = vmatpush1.bf16.xpose.msra.mxu0 0
    %253 = vmatprep.subr.bf16.mxu0 0
    %254 = vmatpush1.bf16.xpose.msra.mxu0 0
    %255 = vmatprep.subr.bf16.mxu0 0
    %256 = vmatpush1.bf16.xpose.msra.mxu0 0
    %257 = vmatprep.subr.bf16.mxu0 0
    %258 = vmatpush1.bf16.xpose.msra.mxu0 0
    %259 = vmatprep.subr.bf16.mxu0 0
    %260 = vmatpush1.bf16.xpose.msra.mxu0 0
    %261 = vmatprep.subr.bf16.mxu0 0
    %262 = vmatpush1.bf16.xpose.msra.mxu0 0
    %263 = vmatprep.subr.bf16.mxu0 0
    %264 = vmatpush1.bf16.xpose.msra.mxu0 0
    %265 = vmatprep.subr.bf16.mxu0 0
    %266 = vmatpush1.bf16.xpose.msra.mxu0 0
    %267 = vmatprep.mubr.bf16.mxu0 0
    %268 = vmatmul.mubr.bf16.gmra.mrb[0].mxu0 %v230
    %v269 = vpop.f32.mrb[0].mxu0
    %v270 = vadd.f32 %v173, %v269
    %v271 = vpop.f32.mrb[0].mxu0
    %v272 = vpop.f32.mrb[0].mxu0
    %v273 = vpop.f32.mrb[0].mxu0
    %274 = vdwg.mxu0
    %v275 = vsel %vm179, %v221, -inf
    %276 = vmax.xlane.f32.xlu0 %v275
    %v277 = vpop.xlane.xlu0 %276
    %v278 = vsel %vm179, %v270, -inf
    %279 = vmax.xlane.f32.xlu0 %v278
    %v280 = vpop.xlane.xlu0 %279
    %v281 = vsub.f32 %v221, %v277
    %v282 = vsub.f32 %v270, %v280
    %v283 = vmul.f32 %v281, 1.442695
    %v284 = vpow.pop %v283
    %v285 = vmul.f32 %v282, 1.442695
    %v286 = vpow.pop %v285
    %v287 = vsel %vm179, %v284, 0.0
    %288 = vadd.xlane.f32.xlu0 %v287
    %v289 = vpop.xlane.xlu0 %288
    %v290 = vsel %vm179, %v286, 0.0
    %291 = vadd.xlane.f32.xlu0 %v290
    %v292 = vpop.xlane.xlu0 %291
    %v293 = vrcp.pop %v289
    %v294 = vrcp.pop %v292
    %v295 = vmul.f32 %v284, %v293
    %v296 = vmul.f32 %v286, %v294
    %v297 = vpack.c.bf16 %v295, %v295
    %v298 = vpack.c.bf16 %v296, %v296
    %300 = vrot.lane.b32.xlu0 %v162, 64
    %v301 = vpop.permute.xlu0 %300
    %v303 = vsel %vm179, %v297, 0
    %vm305 = vcmask 1043456
    %v307 = vsel %vm305, %v301, 0
    %309 = vmatprep.subr.bf16.mxu0 0
    %310 = vmatpush1.bf16.msra.mxu0 %v307
    %311 = vmatprep.subr.bf16.mxu0 0
    %312 = vmatpush1.bf16.msra.mxu0 0
    %313 = vmatprep.subr.bf16.mxu0 0
    %314 = vmatpush1.bf16.msra.mxu0 0
    %315 = vmatprep.subr.bf16.mxu0 0
    %316 = vmatpush1.bf16.msra.mxu0 0
    %317 = vmatprep.subr.bf16.mxu0 0
    %318 = vmatpush1.bf16.msra.mxu0 0
    %319 = vmatprep.subr.bf16.mxu0 0
    %320 = vmatpush1.bf16.msra.mxu0 0
    %321 = vmatprep.subr.bf16.mxu0 0
    %322 = vmatpush1.bf16.msra.mxu0 0
    %323 = vmatprep.subr.bf16.mxu0 0
    %324 = vmatpush1.bf16.msra.mxu0 0
    %325 = vmatprep.subr.bf16.mxu0 0
    %326 = vmatpush1.bf16.msra.mxu0 0
    %327 = vmatprep.subr.bf16.mxu0 0
    %328 = vmatpush1.bf16.msra.mxu0 0
    %329 = vmatprep.subr.bf16.mxu0 0
    %330 = vmatpush1.bf16.msra.mxu0 0
    %331 = vmatprep.subr.bf16.mxu0 0
    %332 = vmatpush1.bf16.msra.mxu0 0
    %333 = vmatprep.subr.bf16.mxu0 0
    %334 = vmatpush1.bf16.msra.mxu0 0
    %335 = vmatprep.subr.bf16.mxu0 0
    %336 = vmatpush1.bf16.msra.mxu0 0
    %337 = vmatprep.subr.bf16.mxu0 0
    %338 = vmatpush1.bf16.msra.mxu0 0
    %339 = vmatprep.subr.bf16.mxu0 0
    %340 = vmatpush1.bf16.msra.mxu0 0
    %341 = vmatprep.mubr.bf16.mxu0 0
    %342 = vmatmul.mubr.bf16.gmra.mrb[0].mxu0 %v303
    %v343 = vpop.f32.mrb[0].mxu0
    %v344 = vadd.f32 0.0, %v343
    %v345 = vpop.f32.mrb[0].mxu0
    %v346 = vpop.f32.mrb[0].mxu0
    %v347 = vpop.f32.mrb[0].mxu0
    %348 = vdwg.mxu0
    %350 = vrot.lane.b32.xlu0 %v163, 64
    %v351 = vpop.permute.xlu0 %350
    %v353 = vsel %vm179, %v298, 0
    %v356 = vsel %vm305, %v351, 0
    %358 = vmatprep.subr.bf16.mxu0 0
    %359 = vmatpush1.bf16.msra.mxu0 %v356
    %360 = vmatprep.subr.bf16.mxu0 0
    %361 = vmatpush1.bf16.msra.mxu0 0
    %362 = vmatprep.subr.bf16.mxu0 0
    %363 = vmatpush1.bf16.msra.mxu0 0
    %364 = vmatprep.subr.bf16.mxu0 0
    %365 = vmatpush1.bf16.msra.mxu0 0
    %366 = vmatprep.subr.bf16.mxu0 0
    %367 = vmatpush1.bf16.msra.mxu0 0
    %368 = vmatprep.subr.bf16.mxu0 0
    %369 = vmatpush1.bf16.msra.mxu0 0
    %370 = vmatprep.subr.bf16.mxu0 0
    %371 = vmatpush1.bf16.msra.mxu0 0
    %372 = vmatprep.subr.bf16.mxu0 0
    %373 = vmatpush1.bf16.msra.mxu0 0
    %374 = vmatprep.subr.bf16.mxu0 0
    %375 = vmatpush1.bf16.msra.mxu0 0
    %376 = vmatprep.subr.bf16.mxu0 0
    %377 = vmatpush1.bf16.msra.mxu0 0
    %378 = vmatprep.subr.bf16.mxu0 0
    %379 = vmatpush1.bf16.msra.mxu0 0
    %380 = vmatprep.subr.bf16.mxu0 0
    %381 = vmatpush1.bf16.msra.mxu0 0
    %382 = vmatprep.subr.bf16.mxu0 0
    %383 = vmatpush1.bf16.msra.mxu0 0
    %384 = vmatprep.subr.bf16.mxu0 0
    %385 = vmatpush1.bf16.msra.mxu0 0
    %386 = vmatprep.subr.bf16.mxu0 0
    %387 = vmatpush1.bf16.msra.mxu0 0
    %388 = vmatprep.subr.bf16.mxu0 0
    %389 = vmatpush1.bf16.msra.mxu0 0
    %390 = vmatprep.mubr.bf16.mxu0 0
    %391 = vmatmul.mubr.bf16.gmra.mrb[0].mxu0 %v353
    %v392 = vpop.f32.mrb[0].mxu0
    %v393 = vadd.f32 0.0, %v392
    %v394 = vpop.f32.mrb[0].mxu0
    %v395 = vpop.f32.mrb[0].mxu0
    %v396 = vpop.f32.mrb[0].mxu0
    %397 = vdwg.mxu0
    %v398 = vpack.c.bf16 %v393, %v344
    %399 = vst.msk [vmem:[#allocation2] sm:$0xff] %vm179, %v398
    %401 = vrot.lane.b32.xlu0 %v158, 120
    %v402 = vpop.permute.xlu0 %401
    %403 = vrot.lane.b32.xlu0 %v160, 88
    %v404 = vpop.permute.xlu0 %403
    %v406 = vsel %vm179, %v402, 0
    %v409 = vsel %vm179, %v404, 0
    %411 = vmatprep.subr.bf16.mxu0 0
    %412 = vmatpush1.bf16.xpose.msra.mxu0 %v409
    %413 = vmatprep.subr.bf16.mxu0 0
    %414 = vmatpush1.bf16.xpose.msra.mxu0 0
    %415 = vmatprep.subr.bf16.mxu0 0
    %416 = vmatpush1.bf16.xpose.msra.mxu0 0
    %417 = vmatprep.subr.bf16.mxu0 0
    %418 = vmatpush1.bf16.xpose.msra.mxu0 0
    %419 = vmatprep.subr.bf16.mxu0 0
    %420 = vmatpush1.bf16.xpose.msra.mxu0 0
    %421 = vmatprep.subr.bf16.mxu0 0
    %422 = vmatpush1.bf16.xpose.msra.mxu0 0
    %423 = vmatprep.subr.bf16.mxu0 0
    %424 = vmatpush1.bf16.xpose.msra.mxu0 0
    %425 = vmatprep.subr.bf16.mxu0 0
    %426 = vmatpush1.bf16.xpose.msra.mxu0 0
    %427 = vmatprep.subr.bf16.mxu0 0
    %428 = vmatpush1.bf16.xpose.msra.mxu0 0
    %429 = vmatprep.subr.bf16.mxu0 0
    %430 = vmatpush1.bf16.xpose.msra.mxu0 0
    %431 = vmatprep.subr.bf16.mxu0 0
    %432 = vmatpush1.bf16.xpose.msra.mxu0 0
    %433 = vmatprep.subr.bf16.mxu0 0
    %434 = vmatpush1.bf16.xpose.msra.mxu0 0
    %435 = vmatprep.subr.bf16.mxu0 0
    %436 = vmatpush1.bf16.xpose.msra.mxu0 0
    %437 = vmatprep.subr.bf16.mxu0 0
    %438 = vmatpush1.bf16.xpose.msra.mxu0 0
    %439 = vmatprep.subr.bf16.mxu0 0
    %440 = vmatpush1.bf16.xpose.msra.mxu0 0
    %441 = vmatprep.subr.bf16.mxu0 0
    %442 = vmatpush1.bf16.xpose.msra.mxu0 0
    %443 = vmatprep.mubr.bf16.mxu0 0
    %444 = vmatmul.mubr.bf16.gmra.mrb[0].mxu0 %v406
    %v445 = vpop.f32.mrb[0].mxu0
    %v446 = vadd.f32 %v169, %v445
    %v447 = vpop.f32.mrb[0].mxu0
    %v448 = vpop.f32.mrb[0].mxu0
    %v449 = vpop.f32.mrb[0].mxu0
    %450 = vdwg.mxu0
    %452 = vrot.lane.b32.xlu0 %v159, 120
    %v453 = vpop.permute.xlu0 %452
    %454 = vrot.lane.b32.xlu0 %v161, 88
    %v455 = vpop.permute.xlu0 %454
    %v457 = vsel %vm179, %v453, 0
    %v460 = vsel %vm179, %v455, 0
    %462 = vmatprep.subr.bf16.mxu0 0
    %463 = vmatpush1.bf16.xpose.msra.mxu0 %v460
    %464 = vmatprep.subr.bf16.mxu0 0
    %465 = vmatpush1.bf16.xpose.msra.mxu0 0
    %466 = vmatprep.subr.bf16.mxu0 0
    %467 = vmatpush1.bf16.xpose.msra.mxu0 0
    %468 = vmatprep.subr.bf16.mxu0 0
    %469 = vmatpush1.bf16.xpose.msra.mxu0 0
    %470 = vmatprep.subr.bf16.mxu0 0
    %471 = vmatpush1.bf16.xpose.msra.mxu0 0
    %472 = vmatprep.subr.bf16.mxu0 0
    %473 = vmatpush1.bf16.xpose.msra.mxu0 0
    %474 = vmatprep.subr.bf16.mxu0 0
    %475 = vmatpush1.bf16.xpose.msra.mxu0 0
    %476 = vmatprep.subr.bf16.mxu0 0
    %477 = vmatpush1.bf16.xpose.msra.mxu0 0
    %478 = vmatprep.subr.bf16.mxu0 0
    %479 = vmatpush1.bf16.xpose.msra.mxu0 0
    %480 = vmatprep.subr.bf16.mxu0 0
    %481 = vmatpush1.bf16.xpose.msra.mxu0 0
    %482 = vmatprep.subr.bf16.mxu0 0
    %483 = vmatpush1.bf16.xpose.msra.mxu0 0
    %484 = vmatprep.subr.bf16.mxu0 0
    %485 = vmatpush1.bf16.xpose.msra.mxu0 0
    %486 = vmatprep.subr.bf16.mxu0 0
    %487 = vmatpush1.bf16.xpose.msra.mxu0 0
    %488 = vmatprep.subr.bf16.mxu0 0
    %489 = vmatpush1.bf16.xpose.msra.mxu0 0
    %490 = vmatprep.subr.bf16.mxu0 0
    %491 = vmatpush1.bf16.xpose.msra.mxu0 0
    %492 = vmatprep.subr.bf16.mxu0 0
    %493 = vmatpush1.bf16.xpose.msra.mxu0 0
    %494 = vmatprep.mubr.bf16.mxu0 0
    %495 = vmatmul.mubr.bf16.gmra.mrb[0].mxu0 %v457
    %v496 = vpop.f32.mrb[0].mxu0
    %v497 = vadd.f32 %v173, %v496
    %v498 = vpop.f32.mrb[0].mxu0
    %v499 = vpop.f32.mrb[0].mxu0
    %v500 = vpop.f32.mrb[0].mxu0
    %501 = vdwg.mxu0
    %v502 = vsel %vm179, %v446, -inf
    %503 = vmax.xlane.f32.xlu0 %v502
    %v504 = vpop.xlane.xlu0 %503
    %v505 = vsel %vm179, %v497, -inf
    %506 = vmax.xlane.f32.xlu0 %v505
    %v507 = vpop.xlane.xlu0 %506
    %v508 = vsub.f32 %v446, %v504
    %v509 = vsub.f32 %v497, %v507
    %v510 = vmul.f32 %v508, 1.442695
    %v511 = vpow.pop %v510
    %v512 = vmul.f32 %v509, 1.442695
    %v513 = vpow.pop %v512
    %v514 = vsel %vm179, %v511, 0.0
    %515 = vadd.xlane.f32.xlu0 %v514
    %v516 = vpop.xlane.xlu0 %515
    %v517 = vsel %vm179, %v513, 0.0
    %518 = vadd.xlane.f32.xlu0 %v517
    %v519 = vpop.xlane.xlu0 %518
    %v520 = vrcp.pop %v516
    %v521 = vrcp.pop %v519
    %v522 = vmul.f32 %v511, %v520
    %v523 = vmul.f32 %v513, %v521
    %v524 = vpack.c.bf16 %v522, %v522
    %v525 = vpack.c.bf16 %v523, %v523
    %526 = vrot.lane.b32.xlu0 %v162, 56
    %v527 = vpop.permute.xlu0 %526
    %v529 = vsel %vm179, %v524, 0
    %v532 = vsel %vm305, %v527, 0
    %534 = vmatprep.subr.bf16.mxu0 0
    %535 = vmatpush1.bf16.msra.mxu0 %v532
    %536 = vmatprep.subr.bf16.mxu0 0
    %537 = vmatpush1.bf16.msra.mxu0 0
    %538 = vmatprep.subr.bf16.mxu0 0
    %539 = vmatpush1.bf16.msra.mxu0 0
    %540 = vmatprep.subr.bf16.mxu0 0
    %541 = vmatpush1.bf16.msra.mxu0 0
    %542 = vmatprep.subr.bf16.mxu0 0
    %543 = vmatpush1.bf16.msra.mxu0 0
    %544 = vmatprep.subr.bf16.mxu0 0
    %545 = vmatpush1.bf16.msra.mxu0 0
    %546 = vmatprep.subr.bf16.mxu0 0
    %547 = vmatpush1.bf16.msra.mxu0 0
    %548 = vmatprep.subr.bf16.mxu0 0
    %549 = vmatpush1.bf16.msra.mxu0 0
    %550 = vmatprep.subr.bf16.mxu0 0
    %551 = vmatpush1.bf16.msra.mxu0 0
    %552 = vmatprep.subr.bf16.mxu0 0
    %553 = vmatpush1.bf16.msra.mxu0 0
    %554 = vmatprep.subr.bf16.mxu0 0
    %555 = vmatpush1.bf16.msra.mxu0 0
    %556 = vmatprep.subr.bf16.mxu0 0
    %557 = vmatpush1.bf16.msra.mxu0 0
    %558 = vmatprep.subr.bf16.mxu0 0
    %559 = vmatpush1.bf16.msra.mxu0 0
    %560 = vmatprep.subr.bf16.mxu0 0
    %561 = vmatpush1.bf16.msra.mxu0 0
    %562 = vmatprep.subr.bf16.mxu0 0
    %563 = vmatpush1.bf16.msra.mxu0 0
    %564 = vmatprep.subr.bf16.mxu0 0
    %565 = vmatpush1.bf16.msra.mxu0 0
    %566 = vmatprep.mubr.bf16.mxu0 0
    %567 = vmatmul.mubr.bf16.gmra.mrb[0].mxu0 %v529
    %v568 = vpop.f32.mrb[0].mxu0
    %v569 = vadd.f32 0.0, %v568
    %v570 = vpop.f32.mrb[0].mxu0
    %v571 = vpop.f32.mrb[0].mxu0
    %v572 = vpop.f32.mrb[0].mxu0
    %573 = vdwg.mxu0
    %574 = vrot.lane.b32.xlu0 %v163, 56
    %v575 = vpop.permute.xlu0 %574
    %v577 = vsel %vm179, %v525, 0
    %v580 = vsel %vm305, %v575, 0
    %582 = vmatprep.subr.bf16.mxu0 0
    %583 = vmatpush1.bf16.msra.mxu0 %v580
    %584 = vmatprep.subr.bf16.mxu0 0
    %585 = vmatpush1.bf16.msra.mxu0 0
    %586 = vmatprep.subr.bf16.mxu0 0
    %587 = vmatpush1.bf16.msra.mxu0 0
    %588 = vmatprep.subr.bf16.mxu0 0
    %589 = vmatpush1.bf16.msra.mxu0 0
    %590 = vmatprep.subr.bf16.mxu0 0
    %591 = vmatpush1.bf16.msra.mxu0 0
    %592 = vmatprep.subr.bf16.mxu0 0
    %593 = vmatpush1.bf16.msra.mxu0 0
    %594 = vmatprep.subr.bf16.mxu0 0
    %595 = vmatpush1.bf16.msra.mxu0 0
    %596 = vmatprep.subr.bf16.mxu0 0
    %597 = vmatpush1.bf16.msra.mxu0 0
    %598 = vmatprep.subr.bf16.mxu0 0
    %599 = vmatpush1.bf16.msra.mxu0 0
    %600 = vmatprep.subr.bf16.mxu0 0
    %601 = vmatpush1.bf16.msra.mxu0 0
    %602 = vmatprep.subr.bf16.mxu0 0
    %603 = vmatpush1.bf16.msra.mxu0 0
    %604 = vmatprep.subr.bf16.mxu0 0
    %605 = vmatpush1.bf16.msra.mxu0 0
    %606 = vmatprep.subr.bf16.mxu0 0
    %607 = vmatpush1.bf16.msra.mxu0 0
    %608 = vmatprep.subr.bf16.mxu0 0
    %609 = vmatpush1.bf16.msra.mxu0 0
    %610 = vmatprep.subr.bf16.mxu0 0
    %611 = vmatpush1.bf16.msra.mxu0 0
    %612 = vmatprep.subr.bf16.mxu0 0
    %613 = vmatpush1.bf16.msra.mxu0 0
    %614 = vmatprep.mubr.bf16.mxu0 0
    %615 = vmatmul.mubr.bf16.gmra.mrb[0].mxu0 %v577
    %v616 = vpop.f32.mrb[0].mxu0
    %v617 = vadd.f32 0.0, %v616
    %v618 = vpop.f32.mrb[0].mxu0
    %v619 = vpop.f32.mrb[0].mxu0
    %v620 = vpop.f32.mrb[0].mxu0
    %621 = vdwg.mxu0
    %v622 = vpack.c.bf16 %v617, %v569
    %624 = vrot.lane.b32.xlu0 %v622, 8
    %v625 = vpop.permute.xlu0 %624
    %vm627 = vcmask 130112
    %628 = vst.msk [vmem:[#allocation2] sm:$0xff] %vm627, %v625
    %629 = vrot.lane.b32.xlu0 %v158, 112
    %v630 = vpop.permute.xlu0 %629
    %631 = vrot.lane.b32.xlu0 %v160, 80
    %v632 = vpop.permute.xlu0 %631
    %v634 = vsel %vm179, %v630, 0
    %v637 = vsel %vm179, %v632, 0
    %639 = vmatprep.subr.bf16.mxu0 0
    %640 = vmatpush1.bf16.xpose.msra.mxu0 %v637
    %641 = vmatprep.subr.bf16.mxu0 0
    %642 = vmatpush1.bf16.xpose.msra.mxu0 0
    %643 = vmatprep.subr.bf16.mxu0 0
    %644 = vmatpush1.bf16.xpose.msra.mxu0 0
    %645 = vmatprep.subr.bf16.mxu0 0
    %646 = vmatpush1.bf16.xpose.msra.mxu0 0
    %647 = vmatprep.subr.bf16.mxu0 0
    %648 = vmatpush1.bf16.xpose.msra.mxu0 0
    %649 = vmatprep.subr.bf16.mxu0 0
    %650 = vmatpush1.bf16.xpose.msra.mxu0 0
    %651 = vmatprep.subr.bf16.mxu0 0
    %652 = vmatpush1.bf16.xpose.msra.mxu0 0
    %653 = vmatprep.subr.bf16.mxu0 0
    %654 = vmatpush1.bf16.xpose.msra.mxu0 0
    %655 = vmatprep.subr.bf16.mxu0 0
    %656 = vmatpush1.bf16.xpose.msra.mxu0 0
    %657 = vmatprep.subr.bf16.mxu0 0
    %658 = vmatpush1.bf16.xpose.msra.mxu0 0
    %659 = vmatprep.subr.bf16.mxu0 0
    %660 = vmatpush1.bf16.xpose.msra.mxu0 0
    %661 = vmatprep.subr.bf16.mxu0 0
    %662 = vmatpush1.bf16.xpose.msra.mxu0 0
    %663 = vmatprep.subr.bf16.mxu0 0
    %664 = vmatpush1.bf16.xpose.msra.mxu0 0
    %665 = vmatprep.subr.bf16.mxu0 0
    %666 = vmatpush1.bf16.xpose.msra.mxu0 0
    %667 = vmatprep.subr.bf16.mxu0 0
    %668 = vmatpush1.bf16.xpose.msra.mxu0 0
    %669 = vmatprep.subr.bf16.mxu0 0
    %670 = vmatpush1.bf16.xpose.msra.mxu0 0
    %671 = vmatprep.mubr.bf16.mxu0 0
    %672 = vmatmul.mubr.bf16.gmra.mrb[0].mxu0 %v634
    %v673 = vpop.f32.mrb[0].mxu0
    %v674 = vadd.f32 %v169, %v673
    %v675 = vpop.f32.mrb[0].mxu0
    %v676 = vpop.f32.mrb[0].mxu0
    %v677 = vpop.f32.mrb[0].mxu0
    %678 = vdwg.mxu0
    %679 = vrot.lane.b32.xlu0 %v159, 112
    %v680 = vpop.permute.xlu0 %679
    %681 = vrot.lane.b32.xlu0 %v161, 80
    %v682 = vpop.permute.xlu0 %681
    %v684 = vsel %vm179, %v680, 0
    %v687 = vsel %vm179, %v682, 0
    %689 = vmatprep.subr.bf16.mxu0 0
    %690 = vmatpush1.bf16.xpose.msra.mxu0 %v687
    %691 = vmatprep.subr.bf16.mxu0 0
    %692 = vmatpush1.bf16.xpose.msra.mxu0 0
    %693 = vmatprep.subr.bf16.mxu0 0
    %694 = vmatpush1.bf16.xpose.msra.mxu0 0
    %695 = vmatprep.subr.bf16.mxu0 0
    %696 = vmatpush1.bf16.xpose.msra.mxu0 0
    %697 = vmatprep.subr.bf16.mxu0 0
    %698 = vmatpush1.bf16.xpose.msra.mxu0 0
    %699 = vmatprep.subr.bf16.mxu0 0
    %700 = vmatpush1.bf16.xpose.msra.mxu0 0
    %701 = vmatprep.subr.bf16.mxu0 0
    %702 = vmatpush1.bf16.xpose.msra.mxu0 0
    %703 = vmatprep.subr.bf16.mxu0 0
    %704 = vmatpush1.bf16.xpose.msra.mxu0 0
    %705 = vmatprep.subr.bf16.mxu0 0
    %706 = vmatpush1.bf16.xpose.msra.mxu0 0
    %707 = vmatprep.subr.bf16.mxu0 0
    %708 = vmatpush1.bf16.xpose.msra.mxu0 0
    %709 = vmatprep.subr.bf16.mxu0 0
    %710 = vmatpush1.bf16.xpose.msra.mxu0 0
    %711 = vmatprep.subr.bf16.mxu0 0
    %712 = vmatpush1.bf16.xpose.msra.mxu0 0
    %713 = vmatprep.subr.bf16.mxu0 0
    %714 = vmatpush1.bf16.xpose.msra.mxu0 0
    %715 = vmatprep.subr.bf16.mxu0 0
    %716 = vmatpush1.bf16.xpose.msra.mxu0 0
    %717 = vmatprep.subr.bf16.mxu0 0
    %718 = vmatpush1.bf16.xpose.msra.mxu0 0
    %719 = vmatprep.subr.bf16.mxu0 0
    %720 = vmatpush1.bf16.xpose.msra.mxu0 0
    %721 = vmatprep.mubr.bf16.mxu0 0
    %722 = vmatmul.mubr.bf16.gmra.mrb[0].mxu0 %v684
    %v723 = vpop.f32.mrb[0].mxu0
    %v724 = vadd.f32 %v173, %v723
    %v725 = vpop.f32.mrb[0].mxu0
    %v726 = vpop.f32.mrb[0].mxu0
    %v727 = vpop.f32.mrb[0].mxu0
    %728 = vdwg.mxu0
    %v729 = vsel %vm179, %v674, -inf
    %730 = vmax.xlane.f32.xlu0 %v729
    %v731 = vpop.xlane.xlu0 %730
    %v732 = vsel %vm179, %v724, -inf
    %733 = vmax.xlane.f32.xlu0 %v732
    %v734 = vpop.xlane.xlu0 %733
    %v735 = vsub.f32 %v674, %v731
    %v736 = vsub.f32 %v724, %v734
    %v737 = vmul.f32 %v735, 1.442695
    %v738 = vpow.pop %v737
    %v739 = vmul.f32 %v736, 1.442695
    %v740 = vpow.pop %v739
    %v741 = vsel %vm179, %v738, 0.0
    %742 = vadd.xlane.f32.xlu0 %v741
    %v743 = vpop.xlane.xlu0 %742
    %v744 = vsel %vm179, %v740, 0.0
    %745 = vadd.xlane.f32.xlu0 %v744
    %v746 = vpop.xlane.xlu0 %745
    %v747 = vrcp.pop %v743
    %v748 = vrcp.pop %v746
    %v749 = vmul.f32 %v738, %v747
    %v750 = vmul.f32 %v740, %v748
    %v751 = vpack.c.bf16 %v749, %v749
    %v752 = vpack.c.bf16 %v750, %v750
    %753 = vrot.lane.b32.xlu0 %v162, 48
    %v754 = vpop.permute.xlu0 %753
    %v756 = vsel %vm179, %v751, 0
    %v759 = vsel %vm305, %v754, 0
    %761 = vmatprep.subr.bf16.mxu0 0
    %762 = vmatpush1.bf16.msra.mxu0 %v759
    %763 = vmatprep.subr.bf16.mxu0 0
    %764 = vmatpush1.bf16.msra.mxu0 0
    %765 = vmatprep.subr.bf16.mxu0 0
    %766 = vmatpush1.bf16.msra.mxu0 0
    %767 = vmatprep.subr.bf16.mxu0 0
    %768 = vmatpush1.bf16.msra.mxu0 0
    %769 = vmatprep.subr.bf16.mxu0 0
    %770 = vmatpush1.bf16.msra.mxu0 0
    %771 = vmatprep.subr.bf16.mxu0 0
    %772 = vmatpush1.bf16.msra.mxu0 0
    %773 = vmatprep.subr.bf16.mxu0 0
    %774 = vmatpush1.bf16.msra.mxu0 0
    %775 = vmatprep.subr.bf16.mxu0 0
    %776 = vmatpush1.bf16.msra.mxu0 0
    %777 = vmatprep.subr.bf16.mxu0 0
    %778 = vmatpush1.bf16.msra.mxu0 0
    %779 = vmatprep.subr.bf16.mxu0 0
    %780 = vmatpush1.bf16.msra.mxu0 0
    %781 = vmatprep.subr.bf16.mxu0 0
    %782 = vmatpush1.bf16.msra.mxu0 0
    %783 = vmatprep.subr.bf16.mxu0 0
    %784 = vmatpush1.bf16.msra.mxu0 0
    %785 = vmatprep.subr.bf16.mxu0 0
    %786 = vmatpush1.bf16.msra.mxu0 0
    %787 = vmatprep.subr.bf16.mxu0 0
    %788 = vmatpush1.bf16.msra.mxu0 0
    %789 = vmatprep.subr.bf16.mxu0 0
    %790 = vmatpush1.bf16.msra.mxu0 0
    %791 = vmatprep.subr.bf16.mxu0 0
    %792 = vmatpush1.bf16.msra.mxu0 0
    %793 = vmatprep.mubr.bf16.mxu0 0
    %794 = vmatmul.mubr.bf16.gmra.mrb[0].mxu0 %v756
    %v795 = vpop.f32.mrb[0].mxu0
    %v796 = vadd.f32 0.0, %v795
    %v797 = vpop.f32.mrb[0].mxu0
    %v798 = vpop.f32.mrb[0].mxu0
    %v799 = vpop.f32.mrb[0].mxu0
    %800 = vdwg.mxu0
    %801 = vrot.lane.b32.xlu0 %v163, 48
    %v802 = vpop.permute.xlu0 %801
    %v804 = vsel %vm179, %v752, 0
    %v807 = vsel %vm305, %v802, 0
    %809 = vmatprep.subr.bf16.mxu0 0
    %810 = vmatpush1.bf16.msra.mxu0 %v807
    %811 = vmatprep.subr.bf16.mxu0 0
    %812 = vmatpush1.bf16.msra.mxu0 0
    %813 = vmatprep.subr.bf16.mxu0 0
    %814 = vmatpush1.bf16.msra.mxu0 0
    %815 = vmatprep.subr.bf16.mxu0 0
    %816 = vmatpush1.bf16.msra.mxu0 0
    %817 = vmatprep.subr.bf16.mxu0 0
    %818 = vmatpush1.bf16.msra.mxu0 0
    %819 = vmatprep.subr.bf16.mxu0 0
    %820 = vmatpush1.bf16.msra.mxu0 0
    %821 = vmatprep.subr.bf16.mxu0 0
    %822 = vmatpush1.bf16.msra.mxu0 0
    %823 = vmatprep.subr.bf16.mxu0 0
    %824 = vmatpush1.bf16.msra.mxu0 0
    %825 = vmatprep.subr.bf16.mxu0 0
    %826 = vmatpush1.bf16.msra.mxu0 0
    %827 = vmatprep.subr.bf16.mxu0 0
    %828 = vmatpush1.bf16.msra.mxu0 0
    %829 = vmatprep.subr.bf16.mxu0 0
    %830 = vmatpush1.bf16.msra.mxu0 0
    %831 = vmatprep.subr.bf16.mxu0 0
    %832 = vmatpush1.bf16.msra.mxu0 0
    %833 = vmatprep.subr.bf16.mxu0 0
    %834 = vmatpush1.bf16.msra.mxu0 0
    %835 = vmatprep.subr.bf16.mxu0 0
    %836 = vmatpush1.bf16.msra.mxu0 0
    %837 = vmatprep.subr.bf16.mxu0 0
    %838 = vmatpush1.bf16.msra.mxu0 0
    %839 = vmatprep.subr.bf16.mxu0 0
    %840 = vmatpush1.bf16.msra.mxu0 0
    %841 = vmatprep.mubr.bf16.mxu0 0
    %842 = vmatmul.mubr.bf16.gmra.mrb[0].mxu0 %v804
    %v843 = vpop.f32.mrb[0].mxu0
    %v844 = vadd.f32 0.0, %v843
    %v845 = vpop.f32.mrb[0].mxu0
    %v846 = vpop.f32.mrb[0].mxu0
    %v847 = vpop.f32.mrb[0].mxu0
    %848 = vdwg.mxu0
    %v849 = vpack.c.bf16 %v844, %v796
    %851 = vrot.lane.b32.xlu0 %v849, 16
    %v852 = vpop.permute.xlu0 %851
    %vm854 = vcmask 195712
    %855 = vst.msk [vmem:[#allocation2] sm:$0xff] %vm854, %v852
    %856 = vrot.lane.b32.xlu0 %v158, 104
    %v857 = vpop.permute.xlu0 %856
    %858 = vrot.lane.b32.xlu0 %v160, 72
    %v859 = vpop.permute.xlu0 %858
    %v861 = vsel %vm179, %v857, 0
    %v864 = vsel %vm179, %v859, 0
    %866 = vmatprep.subr.bf16.mxu0 0
    %867 = vmatpush1.bf16.xpose.msra.mxu0 %v864
    %868 = vmatprep.subr.bf16.mxu0 0
    %869 = vmatpush1.bf16.xpose.msra.mxu0 0
    %870 = vmatprep.subr.bf16.mxu0 0
    %871 = vmatpush1.bf16.xpose.msra.mxu0 0
    %872 = vmatprep.subr.bf16.mxu0 0
    %873 = vmatpush1.bf16.xpose.msra.mxu0 0
    %874 = vmatprep.subr.bf16.mxu0 0
    %875 = vmatpush1.bf16.xpose.msra.mxu0 0
    %876 = vmatprep.subr.bf16.mxu0 0
    %877 = vmatpush1.bf16.xpose.msra.mxu0 0
    %878 = vmatprep.subr.bf16.mxu0 0
    %879 = vmatpush1.bf16.xpose.msra.mxu0 0
    %880 = vmatprep.subr.bf16.mxu0 0
    %881 = vmatpush1.bf16.xpose.msra.mxu0 0
    %882 = vmatprep.subr.bf16.mxu0 0
    %883 = vmatpush1.bf16.xpose.msra.mxu0 0
    %884 = vmatprep.subr.bf16.mxu0 0
    %885 = vmatpush1.bf16.xpose.msra.mxu0 0
    %886 = vmatprep.subr.bf16.mxu0 0
    %887 = vmatpush1.bf16.xpose.msra.mxu0 0
    %888 = vmatprep.subr.bf16.mxu0 0
    %889 = vmatpush1.bf16.xpose.msra.mxu0 0
    %890 = vmatprep.subr.bf16.mxu0 0
    %891 = vmatpush1.bf16.xpose.msra.mxu0 0
    %892 = vmatprep.subr.bf16.mxu0 0
    %893 = vmatpush1.bf16.xpose.msra.mxu0 0
    %894 = vmatprep.subr.bf16.mxu0 0
    %895 = vmatpush1.bf16.xpose.msra.mxu0 0
    %896 = vmatprep.subr.bf16.mxu0 0
    %897 = vmatpush1.bf16.xpose.msra.mxu0 0
    %898 = vmatprep.mubr.bf16.mxu0 0
    %899 = vmatmul.mubr.bf16.gmra.mrb[0].mxu0 %v861
    %v900 = vpop.f32.mrb[0].mxu0
    %v901 = vadd.f32 %v169, %v900
    %v902 = vpop.f32.mrb[0].mxu0
    %v903 = vpop.f32.mrb[0].mxu0
    %v904 = vpop.f32.mrb[0].mxu0
    %905 = vdwg.mxu0
    %906 = vrot.lane.b32.xlu0 %v159, 104
    %v907 = vpop.permute.xlu0 %906
    %908 = vrot.lane.b32.xlu0 %v161, 72
    %v909 = vpop.permute.xlu0 %908
    %v911 = vsel %vm179, %v907, 0
    %v914 = vsel %vm179, %v909, 0
    %916 = vmatprep.subr.bf16.mxu0 0
    %917 = vmatpush1.bf16.xpose.msra.mxu0 %v914
    %918 = vmatprep.subr.bf16.mxu0 0
    %919 = vmatpush1.bf16.xpose.msra.mxu0 0
    %920 = vmatprep.subr.bf16.mxu0 0
    %921 = vmatpush1.bf16.xpose.msra.mxu0 0
    %922 = vmatprep.subr.bf16.mxu0 0
    %923 = vmatpush1.bf16.xpose.msra.mxu0 0
    %924 = vmatprep.subr.bf16.mxu0 0
    %925 = vmatpush1.bf16.xpose.msra.mxu0 0
    %926 = vmatprep.subr.bf16.mxu0 0
    %927 = vmatpush1.bf16.xpose.msra.mxu0 0
    %928 = vmatprep.subr.bf16.mxu0 0
    %929 = vmatpush1.bf16.xpose.msra.mxu0 0
    %930 = vmatprep.subr.bf16.mxu0 0
    %931 = vmatpush1.bf16.xpose.msra.mxu0 0
    %932 = vmatprep.subr.bf16.mxu0 0
    %933 = vmatpush1.bf16.xpose.msra.mxu0 0
    %934 = vmatprep.subr.bf16.mxu0 0
    %935 = vmatpush1.bf16.xpose.msra.mxu0 0
    %936 = vmatprep.subr.bf16.mxu0 0
    %937 = vmatpush1.bf16.xpose.msra.mxu0 0
    %938 = vmatprep.subr.bf16.mxu0 0
    %939 = vmatpush1.bf16.xpose.msra.mxu0 0
    %940 = vmatprep.subr.bf16.mxu0 0
    %941 = vmatpush1.bf16.xpose.msra.mxu0 0
    %942 = vmatprep.subr.bf16.mxu0 0
    %943 = vmatpush1.bf16.xpose.msra.mxu0 0
    %944 = vmatprep.subr.bf16.mxu0 0
    %945 = vmatpush1.bf16.xpose.msra.mxu0 0
    %946 = vmatprep.subr.bf16.mxu0 0
    %947 = vmatpush1.bf16.xpose.msra.mxu0 0
    %948 = vmatprep.mubr.bf16.mxu0 0
    %949 = vmatmul.mubr.bf16.gmra.mrb[0].mxu0 %v911
    %v950 = vpop.f32.mrb[0].mxu0
    %v951 = vadd.f32 %v173, %v950
    %v952 = vpop.f32.mrb[0].mxu0
    %v953 = vpop.f32.mrb[0].mxu0
    %v954 = vpop.f32.mrb[0].mxu0
    %955 = vdwg.mxu0
    %v956 = vsel %vm179, %v901, -inf
    %957 = vmax.xlane.f32.xlu0 %v956
    %v958 = vpop.xlane.xlu0 %957
    %v959 = vsel %vm179, %v951, -inf
    %960 = vmax.xlane.f32.xlu0 %v959
    %v961 = vpop.xlane.xlu0 %960
    %v962 = vsub.f32 %v901, %v958
    %v963 = vsub.f32 %v951, %v961
    %v964 = vmul.f32 %v962, 1.442695
    %v965 = vpow.pop %v964
    %v966 = vmul.f32 %v963, 1.442695
    %v967 = vpow.pop %v966
    %v968 = vsel %vm179, %v965, 0.0
    %969 = vadd.xlane.f32.xlu0 %v968
    %v970 = vpop.xlane.xlu0 %969
    %v971 = vsel %vm179, %v967, 0.0
    %972 = vadd.xlane.f32.xlu0 %v971
    %v973 = vpop.xlane.xlu0 %972
    %v974 = vrcp.pop %v970
    %v975 = vrcp.pop %v973
    %v976 = vmul.f32 %v965, %v974
    %v977 = vmul.f32 %v967, %v975
    %v978 = vpack.c.bf16 %v976, %v976
    %v979 = vpack.c.bf16 %v977, %v977
    %980 = vrot.lane.b32.xlu0 %v162, 40
    %v981 = vpop.permute.xlu0 %980
    %v983 = vsel %vm179, %v978, 0
    %v986 = vsel %vm305, %v981, 0
    %988 = vmatprep.subr.bf16.mxu0 0
    %989 = vmatpush1.bf16.msra.mxu0 %v986
    %990 = vmatprep.subr.bf16.mxu0 0
    %991 = vmatpush1.bf16.msra.mxu0 0
    %992 = vmatprep.subr.bf16.mxu0 0
    %993 = vmatpush1.bf16.msra.mxu0 0
    %994 = vmatprep.subr.bf16.mxu0 0
    %995 = vmatpush1.bf16.msra.mxu0 0
    %996 = vmatprep.subr.bf16.mxu0 0
    %997 = vmatpush1.bf16.msra.mxu0 0
    %998 = vmatprep.subr.bf16.mxu0 0
    %999 = vmatpush1.bf16.msra.mxu0 0
    %1000 = vmatprep.subr.bf16.mxu0 0
    %1001 = vmatpush1.bf16.msra.mxu0 0
    %1002 = vmatprep.subr.bf16.mxu0 0
    %1003 = vmatpush1.bf16.msra.mxu0 0
    %1004 = vmatprep.subr.bf16.mxu0 0
    %1005 = vmatpush1.bf16.msra.mxu0 0
    %1006 = vmatprep.subr.bf16.mxu0 0
    %1007 = vmatpush1.bf16.msra.mxu0 0
    %1008 = vmatprep.subr.bf16.mxu0 0
    %1009 = vmatpush1.bf16.msra.mxu0 0
    %1010 = vmatprep.subr.bf16.mxu0 0
    %1011 = vmatpush1.bf16.msra.mxu0 0
    %1012 = vmatprep.subr.bf16.mxu0 0
    %1013 = vmatpush1.bf16.msra.mxu0 0
    %1014 = vmatprep.subr.bf16.mxu0 0
    %1015 = vmatpush1.bf16.msra.mxu0 0
    %1016 = vmatprep.subr.bf16.mxu0 0
    %1017 = vmatpush1.bf16.msra.mxu0 0
    %1018 = vmatprep.subr.bf16.mxu0 0
    %1019 = vmatpush1.bf16.msra.mxu0 0
    %1020 = vmatprep.mubr.bf16.mxu0 0
    %1021 = vmatmul.mubr.bf16.gmra.mrb[0].mxu0 %v983
    %v1022 = vpop.f32.mrb[0].mxu0
    %v1023 = vadd.f32 0.0, %v1022
    %v1024 = vpop.f32.mrb[0].mxu0
    %v1025 = vpop.f32.mrb[0].mxu0
    %v1026 = vpop.f32.mrb[0].mxu0
    %1027 = vdwg.mxu0
    %1028 = vrot.lane.b32.xlu0 %v163, 40
    %v1029 = vpop.permute.xlu0 %1028
    %v1031 = vsel %vm179, %v979, 0
    %v1034 = vsel %vm305, %v1029, 0
    %1036 = vmatprep.subr.bf16.mxu0 0
    %1037 = vmatpush1.bf16.msra.mxu0 %v1034
    %1038 = vmatprep.subr.bf16.mxu0 0
    %1039 = vmatpush1.bf16.msra.mxu0 0
    %1040 = vmatprep.subr.bf16.mxu0 0
    %1041 = vmatpush1.bf16.msra.mxu0 0
    %1042 = vmatprep.subr.bf16.mxu0 0
    %1043 = vmatpush1.bf16.msra.mxu0 0
    %1044 = vmatprep.subr.bf16.mxu0 0
    %1045 = vmatpush1.bf16.msra.mxu0 0
    %1046 = vmatprep.subr.bf16.mxu0 0
    %1047 = vmatpush1.bf16.msra.mxu0 0
    %1048 = vmatprep.subr.bf16.mxu0 0
    %1049 = vmatpush1.bf16.msra.mxu0 0
    %1050 = vmatprep.subr.bf16.mxu0 0
    %1051 = vmatpush1.bf16.msra.mxu0 0
    %1052 = vmatprep.subr.bf16.mxu0 0
    %1053 = vmatpush1.bf16.msra.mxu0 0
    %1054 = vmatprep.subr.bf16.mxu0 0
    %1055 = vmatpush1.bf16.msra.mxu0 0
    %1056 = vmatprep.subr.bf16.mxu0 0
    %1057 = vmatpush1.bf16.msra.mxu0 0
    %1058 = vmatprep.subr.bf16.mxu0 0
    %1059 = vmatpush1.bf16.msra.mxu0 0
    %1060 = vmatprep.subr.bf16.mxu0 0
    %1061 = vmatpush1.bf16.msra.mxu0 0
    %1062 = vmatprep.subr.bf16.mxu0 0
    %1063 = vmatpush1.bf16.msra.mxu0 0
    %1064 = vmatprep.subr.bf16.mxu0 0
    %1065 = vmatpush1.bf16.msra.mxu0 0
    %1066 = vmatprep.subr.bf16.mxu0 0
    %1067 = vmatpush1.bf16.msra.mxu0 0
    %1068 = vmatprep.mubr.bf16.mxu0 0
    %1069 = vmatmul.mubr.bf16.gmra.mrb[0].mxu0 %v1031
    %v1070 = vpop.f32.mrb[0].mxu0
    %v1071 = vadd.f32 0.0, %v1070
    %v1072 = vpop.f32.mrb[0].mxu0
    %v1073 = vpop.f32.mrb[0].mxu0
    %v1074 = vpop.f32.mrb[0].mxu0
    %1075 = vdwg.mxu0
    %v1076 = vpack.c.bf16 %v1071, %v1023
    %1078 = vrot.lane.b32.xlu0 %v1076, 24
    %v1079 = vpop.permute.xlu0 %1078
    %vm1081 = vcmask 261312
    %1082 = vst.msk [vmem:[#allocation2] sm:$0xff] %vm1081, %v1079
    %v1083 = vld [vmem:[#allocation2] sm:$0xff]
    %v1084 = vld [vmem:[%s3] sm:$0xf]
    %v1085 = vld [vmem:[%s3 + $0x4] sm:$0xf]
    %v1086 = vld [vmem:[%s3 + $0x8] sm:$0xf]
    %v1087 = vld [vmem:[%s3 + $0xc] sm:$0xf]
    %v1088 = vld [vmem:[#allocation6 + $0x3] sm:$0x1]
    %v1089 = vlaneseq
    %v1090 = vshrl.u32 %v1089, 7
    %v1091 = vsub.s32 0, %v1090
    %v1092 = vrot.slane %v1088, %v1091
    %v1097 = vunpack.c.l.b16 %v1084
    %v1098 = vunpack.c.l.b16 %v1085
    %v1099 = vunpack.c.l.b16 %v1086
    %v1100 = vunpack.c.l.b16 %v1087
    %v1101 = vpack.c.b16 %v1098, %v1097
    %v1102 = vpack.c.b16 %v1100, %v1099
    %v1106 = vsel %vm84, %v1083, 0
    %1108 = vmatprep.subr.bf16.mxu0 0
    %1109 = vmatpush1.bf16.msra.mxu0 %v1101
    %1110 = vmatprep.subr.bf16.mxu0 0
    %1111 = vmatpush1.bf16.msra.mxu0 %v1102
    %1112 = vmatprep.subr.bf16.mxu0 0
    %1113 = vmatpush1.bf16.msra.mxu0 0
    %1114 = vmatprep.subr.bf16.mxu0 0
    %1115 = vmatpush1.bf16.msra.mxu0 0
    %1116 = vmatprep.subr.bf16.mxu0 0
    %1117 = vmatpush1.bf16.msra.mxu0 0
    %1118 = vmatprep.subr.bf16.mxu0 0
    %1119 = vmatpush1.bf16.msra.mxu0 0
    %1120 = vmatprep.subr.bf16.mxu0 0
    %1121 = vmatpush1.bf16.msra.mxu0 0
    %1122 = vmatprep.subr.bf16.mxu0 0
    %1123 = vmatpush1.bf16.msra.mxu0 0
    %1124 = vmatprep.subr.bf16.mxu0 0
    %1125 = vmatpush1.bf16.msra.mxu0 0
    %1126 = vmatprep.subr.bf16.mxu0 0
    %1127 = vmatpush1.bf16.msra.mxu0 0
    %1128 = vmatprep.subr.bf16.mxu0 0
    %1129 = vmatpush1.bf16.msra.mxu0 0
    %1130 = vmatprep.subr.bf16.mxu0 0
    %1131 = vmatpush1.bf16.msra.mxu0 0
    %1132 = vmatprep.subr.bf16.mxu0 0
    %1133 = vmatpush1.bf16.msra.mxu0 0
    %1134 = vmatprep.subr.bf16.mxu0 0
    %1135 = vmatpush1.bf16.msra.mxu0 0
    %1136 = vmatprep.subr.bf16.mxu0 0
    %1137 = vmatpush1.bf16.msra.mxu0 0
    %1138 = vmatprep.subr.bf16.mxu0 0
    %1139 = vmatpush1.bf16.msra.mxu0 0
    %1140 = vmatprep.mubr.bf16.mxu0 0
    %1141 = vmatmul.mubr.bf16.gmra.mrb[0].mxu0 %v1106
    %v1142 = vpop.f32.mrb[0].mxu0
    %v1143 = vadd.f32 %v1092, %v1142
    %v1144 = vpop.f32.mrb[0].mxu0
    %v1145 = vpop.f32.mrb[0].mxu0
    %v1146 = vadd.f32 %v1092, %v1145
    %v1147 = vpop.f32.mrb[0].mxu0
    %1148 = vdwg.mxu0
    %v1149 = vadd.f32 %v59, %v1143
    %v1150 = vadd.f32 %v60, %v1146
    %v1151 = vld [vmem:[#allocation6 + $0x5] sm:$0x1]
    %v1152 = vld [vmem:[#allocation6 + $0x6] sm:$0x1]
    %v1153 = vsel %vm84, %v1149, 0.0
    %1154 = vadd.xlane.f32.xlu0 %v1153
    %v1155 = vpop.xlane.xlu0 %1154
    %v1156 = vsel %vm84, %v1150, 0.0
    %1157 = vadd.xlane.f32.xlu0 %v1156
    %v1158 = vpop.xlane.xlu0 %1157
    %v1159 = vrcp.pop 32.0
    %v1160 = vmul.f32 %v1155, %v1159
    %v1161 = vmul.f32 %v1158, %v1159
    %v1162 = vsub.f32 %v1149, %v1160
    %v1163 = vsub.f32 %v1150, %v1161
    %v1164 = vmul.f32 %v1162, %v1162
    %v1165 = vmul.f32 %v1163, %v1163
    %v1166 = vsel %vm84, %v1164, 0.0
    %1167 = vadd.xlane.f32.xlu0 %v1166
    %v1168 = vpop.xlane.xlu0 %1167
    %v1169 = vsel %vm84, %v1165, 0.0
    %1170 = vadd.xlane.f32.xlu0 %v1169
    %v1171 = vpop.xlane.xlu0 %1170
    %v1172 = vmul.f32 %v1168, %v1159
    %v1173 = vmul.f32 %v1171, %v1159
    %v1174 = vadd.f32 %v1172, 1e-05
    %v1175 = vadd.f32 %v1173, 1e-05
    %v1176 = vrsqrt.pop %v1174
    %v1177 = vrsqrt.pop %v1175
    %v1178 = vmul.f32 %v1162, %v1176
    %v1179 = vmul.f32 %v1163, %v1177
    %v1180 = vlaneseq
    %v1181 = vshrl.u32 %v1180, 7
    %v1182 = vsub.s32 0, %v1181
    %v1183 = vrot.slane %v1151, %v1182
    %v1184 = vmul.f32 %v1178, %v1183
    %v1185 = vmul.f32 %v1179, %v1183
    %v1186 = vlaneseq
    %v1187 = vshrl.u32 %v1186, 7
    %v1188 = vsub.s32 0, %v1187
    %v1189 = vrot.slane %v1152, %v1188
    %v1190 = vadd.f32 %v1184, %v1189
    %v1191 = vadd.f32 %v1185, %v1189
    %v1192 = vpack.c.bf16 %v1191, %v1190
    %v1193 = vld [vmem:[#allocation3] sm:$0xf]
    %v1194 = vld [vmem:[#allocation3 + $0x4] sm:$0xf]
    %v1195 = vld [vmem:[#allocation3 + $0x8] sm:$0xf]
    %v1196 = vld [vmem:[#allocation3 + $0xc] sm:$0xf]
    %v1197 = vld [vmem:[%s7] sm:$0x1]
    %v1199 = vlaneseq
    %v1200 = vshrl.u32 %v1199, 7
    %v1201 = vsub.s32 0, %v1200
    %v1202 = vrot.slane %v1197, %v1201
    %v1208 = vunpack.c.l.b16 %v1193
    %v1209 = vunpack.c.l.b16 %v1194
    %v1210 = vunpack.c.l.b16 %v1195
    %v1211 = vunpack.c.l.b16 %v1196
    %v1212 = vpack.c.b16 %v1209, %v1208
    %v1213 = vpack.c.b16 %v1211, %v1210
    %v1217 = vsel %vm84, %v1192, 0
    %1219 = vmatprep.subr.bf16.mxu0 0
    %1220 = vmatpush1.bf16.msra.mxu0 %v1212
    %1221 = vmatprep.subr.bf16.mxu0 0
    %1222 = vmatpush1.bf16.msra.mxu0 %v1213
    %1223 = vmatprep.subr.bf16.mxu0 0
    %1224 = vmatpush1.bf16.msra.mxu0 0
    %1225 = vmatprep.subr.bf16.mxu0 0
    %1226 = vmatpush1.bf16.msra.mxu0 0
    %1227 = vmatprep.subr.bf16.mxu0 0
    %1228 = vmatpush1.bf16.msra.mxu0 0
    %1229 = vmatprep.subr.bf16.mxu0 0
    %1230 = vmatpush1.bf16.msra.mxu0 0
    %1231 = vmatprep.subr.bf16.mxu0 0
    %1232 = vmatpush1.bf16.msra.mxu0 0
    %1233 = vmatprep.subr.bf16.mxu0 0
    %1234 = vmatpush1.bf16.msra.mxu0 0
    %1235 = vmatprep.subr.bf16.mxu0 0
    %1236 = vmatpush1.bf16.msra.mxu0 0
    %1237 = vmatprep.subr.bf16.mxu0 0
    %1238 = vmatpush1.bf16.msra.mxu0 0
    %1239 = vmatprep.subr.bf16.mxu0 0
    %1240 = vmatpush1.bf16.msra.mxu0 0
    %1241 = vmatprep.subr.bf16.mxu0 0
    %1242 = vmatpush1.bf16.msra.mxu0 0
    %1243 = vmatprep.subr.bf16.mxu0 0
    %1244 = vmatpush1.bf16.msra.mxu0 0
    %1245 = vmatprep.subr.bf16.mxu0 0
    %1246 = vmatpush1.bf16.msra.mxu0 0
    %1247 = vmatprep.subr.bf16.mxu0 0
    %1248 = vmatpush1.bf16.msra.mxu0 0
    %1249 = vmatprep.subr.bf16.mxu0 0
    %1250 = vmatpush1.bf16.msra.mxu0 0
    %1251 = vmatprep.mubr.bf16.mxu0 0
    %1252 = vmatmul.mubr.bf16.gmra.mrb[0].mxu0 %v1217
    %v1253 = vpop.f32.mrb[0].mxu0
    %v1254 = vadd.f32 %v1202, %v1253
    %v1255 = vpop.f32.mrb[0].mxu0
    %v1256 = vpop.f32.mrb[0].mxu0
    %v1257 = vadd.f32 %v1202, %v1256
    %v1258 = vpop.f32.mrb[0].mxu0
    %1259 = vdwg.mxu0
    %v1260 = vxor.u32 %v1254, 2147483648
    %v1261 = vxor.u32 %v1257, 2147483648
    %v1262 = vmul.f32 %v1260, 1.442695
    %v1263 = vpow.pop %v1262
    %v1264 = vmul.f32 %v1261, 1.442695
    %v1265 = vpow.pop %v1264
    %v1266 = vadd.f32 %v1263, 1.0
    %v1267 = vadd.f32 %v1265, 1.0
    %v1268 = vrcp.pop %v1266
    %v1269 = vmul.f32 1.0, %v1268
    %v1270 = vrcp.pop %v1267
    %v1271 = vmul.f32 1.0, %v1270
    %1273 = vset.pattern.permute.xlu0 64
    %1274 = vperm.xlu0 %1273, %v1269
    %v1275 = vpop.permute.xlu0 %1274
    %1278 = vset.pattern.permute.xlu0 64
    %1279 = vperm.xlu0 %1278, %v1271
    %v1280 = vpop.permute.xlu0 %1279
    %v1282 = vmul.f32 %v1254, %v1275
    %v1283 = vmul.f32 %v1257, %v1280
    %v1284 = vmax.f32 %v1282, 0.0
    %v1285 = vmax.f32 %v1283, 0.0
    %v1286 = vpack.c.bf16 %v1285, %v1284
    %v1287 = vld [vmem:[%s5] sm:$0xf]
    %v1288 = vld [vmem:[%s5 + $0x4] sm:$0xf]
    %v1289 = vld [vmem:[%s5 + $0x8] sm:$0xf]
    %v1290 = vld [vmem:[%s5 + $0xc] sm:$0xf]
    %v1291 = vld [vmem:[%s5 + $0x10] sm:$0xf]
    %v1292 = vld [vmem:[%s5 + $0x14] sm:$0xf]
    %v1293 = vld [vmem:[%s5 + $0x18] sm:$0xf]
    %v1294 = vld [vmem:[%s5 + $0x1c] sm:$0xf]
    %v1295 = vld [vmem:[#allocation6 + $0x4] sm:$0x1]
    %v1296 = vlaneseq
    %v1297 = vshrl.u32 %v1296, 7
    %v1298 = vsub.s32 0, %v1297
    %v1299 = vrot.slane %v1295, %v1298
    %v1308 = vunpack.c.l.b16 %v1287
    %v1309 = vunpack.c.l.b16 %v1288
    %v1310 = vunpack.c.l.b16 %v1289
    %v1311 = vunpack.c.l.b16 %v1290
    %v1312 = vunpack.c.l.b16 %v1291
    %v1313 = vunpack.c.l.b16 %v1292
    %v1314 = vunpack.c.l.b16 %v1293
    %v1315 = vunpack.c.l.b16 %v1294
    %v1316 = vpack.c.b16 %v1309, %v1308
    %v1317 = vpack.c.b16 %v1311, %v1310
    %v1318 = vpack.c.b16 %v1313, %v1312
    %v1319 = vpack.c.b16 %v1315, %v1314
    %vm1324 = vcmask 523264
    %v1326 = vsel %vm1324, %v1286, 0
    %1328 = vmatprep.subr.bf16.mxu0 0
    %1329 = vmatpush1.bf16.msra.mxu0 %v1316
    %1330 = vmatprep.subr.bf16.mxu0 0
    %1331 = vmatpush1.bf16.msra.mxu0 %v1317
    %1332 = vmatprep.subr.bf16.mxu0 0
    %1333 = vmatpush1.bf16.msra.mxu0 %v1318
    %1334 = vmatprep.subr.bf16.mxu0 0
    %1335 = vmatpush1.bf16.msra.mxu0 %v1319
    %1336 = vmatprep.subr.bf16.mxu0 0
    %1337 = vmatpush1.bf16.msra.mxu0 0
    %1338 = vmatprep.subr.bf16.mxu0 0
    %1339 = vmatpush1.bf16.msra.mxu0 0
    %1340 = vmatprep.subr.bf16.mxu0 0
    %1341 = vmatpush1.bf16.msra.mxu0 0
    %1342 = vmatprep.subr.bf16.mxu0 0
    %1343 = vmatpush1.bf16.msra.mxu0 0
    %1344 = vmatprep.subr.bf16.mxu0 0
    %1345 = vmatpush1.bf16.msra.mxu0 0
    %1346 = vmatprep.subr.bf16.mxu0 0
    %1347 = vmatpush1.bf16.msra.mxu0 0
    %1348 = vmatprep.subr.bf16.mxu0 0
    %1349 = vmatpush1.bf16.msra.mxu0 0
    %1350 = vmatprep.subr.bf16.mxu0 0
    %1351 = vmatpush1.bf16.msra.mxu0 0
    %1352 = vmatprep.subr.bf16.mxu0 0
    %1353 = vmatpush1.bf16.msra.mxu0 0
    %1354 = vmatprep.subr.bf16.mxu0 0
    %1355 = vmatpush1.bf16.msra.mxu0 0
    %1356 = vmatprep.subr.bf16.mxu0 0
    %1357 = vmatpush1.bf16.msra.mxu0 0
    %1358 = vmatprep.subr.bf16.mxu0 0
    %1359 = vmatpush1.bf16.msra.mxu0 0
    %1360 = vmatprep.mubr.bf16.mxu0 0
    %1361 = vmatmul.mubr.bf16.gmra.mrb[0].mxu0 %v1326
    %v1362 = vpop.f32.mrb[0].mxu0
    %v1363 = vadd.f32 %v1299, %v1362
    %v1364 = vpop.f32.mrb[0].mxu0
    %v1365 = vpop.f32.mrb[0].mxu0
    %v1366 = vadd.f32 %v1299, %v1365
    %v1367 = vpop.f32.mrb[0].mxu0
    %1368 = vdwg.mxu0
    %v1369 = vadd.f32 %v1190, %v1363
    %v1370 = vadd.f32 %v1191, %v1366
    %v1371 = vld [vmem:[#allocation6 + $0x7] sm:$0x1]
    %v1372 = vld [vmem:[#allocation6 + $0x8] sm:$0x1]
    %v1373 = vsel %vm84, %v1369, 0.0
    %1374 = vadd.xlane.f32.xlu0 %v1373
    %v1375 = vpop.xlane.xlu0 %1374
    %v1376 = vsel %vm84, %v1370, 0.0
    %1377 = vadd.xlane.f32.xlu0 %v1376
    %v1378 = vpop.xlane.xlu0 %1377
    %v1379 = vmul.f32 %v1375, %v1159
    %v1380 = vmul.f32 %v1378, %v1159
    %v1381 = vsub.f32 %v1369, %v1379
    %v1382 = vsub.f32 %v1370, %v1380
    %v1383 = vmul.f32 %v1381, %v1381
    %v1384 = vmul.f32 %v1382, %v1382
    %v1385 = vsel %vm84, %v1383, 0.0
    %1386 = vadd.xlane.f32.xlu0 %v1385
    %v1387 = vpop.xlane.xlu0 %1386
    %v1388 = vsel %vm84, %v1384, 0.0
    %1389 = vadd.xlane.f32.xlu0 %v1388
    %v1390 = vpop.xlane.xlu0 %1389
    %v1391 = vmul.f32 %v1387, %v1159
    %v1392 = vmul.f32 %v1390, %v1159
    %v1393 = vadd.f32 %v1391, 1e-05
    %v1394 = vadd.f32 %v1392, 1e-05
    %v1395 = vrsqrt.pop %v1393
    %v1396 = vrsqrt.pop %v1394
    %v1397 = vmul.f32 %v1381, %v1395
    %v1398 = vmul.f32 %v1382, %v1396
    %v1399 = vlaneseq
    %v1400 = vshrl.u32 %v1399, 7
    %v1401 = vsub.s32 0, %v1400
    %v1402 = vrot.slane %v1371, %v1401
    %v1403 = vmul.f32 %v1397, %v1402
    %v1404 = vmul.f32 %v1398, %v1402
    %v1405 = vlaneseq
    %v1406 = vshrl.u32 %v1405, 7
    %v1407 = vsub.s32 0, %v1406
    %v1408 = vrot.slane %v1372, %v1407
    %v1409 = vadd.f32 %v1403, %v1408
    %v1410 = vadd.f32 %v1404, %v1408
    %1411 = vst.msk [vmem:[#allocation8] sm:$0xff] %vm84, %v1409
    %1412 = vst.msk [vmem:[#allocation8 + $0x8] sm:$0xff] %vm84, %v1410
    // Predicated region
    $region42: #{tpu_custom_call.1} parent=1 // pred_check
      _
    $region43: #{tpu_custom_call.1} parent=1 // pred_check_branch
      %1414 = sbr.rel (0) target = $region45
    $region44: #{tpu_custom_call.1} parent=1 // pred_region
      %s1416 = ssub.s32 256, 256
      %1417 = vsyncadd [#allocation5], %s1416
      %s1418 = sshll.u32 [#allocation8], 4
      %s1419 = int_to_ptr.vmem [resolvable:$true] %s1418
      %1424 = dma.vmem_to_hbm [thread:$0]  %s1419, 256, %s8, [#allocation5], 128, 128, 8
    $region45: #{tpu_custom_call.1} parent=1 // pred_fallthru
      _
    // Predicated region
    $region46: #{tpu_custom_call.1} parent=1 // pred_check
      _
    $region47: #{tpu_custom_call.1} parent=1 // pred_check_branch
      %1426 = sbr.rel (0) target = $region49
    $region48: #{tpu_custom_call.1} parent=1 // pred_region
      %1427 = dma.done [#allocation5], 256
    $region49: #{tpu_custom_call.1} parent=1 // pred_fallthru
      _
    %1428 = vsyncpa [#allocation4], 1
    %1429 = vsyncpa [#allocation7], 1
    %1430 = vsyncpa [#allocation5], 1

</llo_original>
